<compile_context>
chip_gen: v7x
topology: tpu7x:2x2x1
jax: 0.10.0
libtpu: 0.0.40
codegen_flags: <defaults>
</compile_context>

<pallas_src>
import functools

import jax
import jax.numpy as jnp
from jax.experimental import pallas as pl
from jax.experimental.pallas import tpu as pltpu


def pam_kernel(gamma_ref, x_ref, k_ref, v_ref, wq_ref, bq_ref, o_ref, acc_sc,
               *, tkv, n_valid):
    """One (batch, query-tile) grid step.

    x_ref:  (tq, C)        f32   raw input tile (query source + residual)
    k_ref:  (Nkv_pad, Cq)  bf16  projected keys, whole batch element (VMEM resident)
    v_ref:  (Nkv_pad, C)   bf16  projected values, whole batch element (VMEM resident)
    wq_ref: (C, Cq)        bf16  query 1x1-conv weight (transposed)
    bq_ref: (1, Cq)        f32   query 1x1-conv bias
    o_ref:  (tq, C)        f32   output tile
    acc_sc: (tq, C)        f32   VMEM accumulator
    """
    tq, C = acc_sc.shape
    n_kv_pad = k_ref.shape[0]
    n_chunks = n_kv_pad // tkv

    # ---- query projection (1x1 conv) for this tile: one small MXU matmul per grid step.
    xq = x_ref[...].astype(jnp.bfloat16)                                  # (tq, C)
    q = (jnp.dot(xq, wq_ref[...], preferred_element_type=jnp.float32)
         + bq_ref[...]).astype(jnp.bfloat16)                              # (tq, Cq)

    acc_sc[...] = jnp.zeros_like(acc_sc)
    m0 = jnp.full((tq, 1), -jnp.inf, dtype=jnp.float32)
    l0 = jnp.zeros((tq, 1), dtype=jnp.float32)

    def body(j, carry):
        m_prev, l_prev = carry
        start = pl.multiple_of(j * tkv, tkv)
        k = k_ref[pl.ds(start, tkv), :]                                   # (tkv, Cq) bf16
        v = v_ref[pl.ds(start, tkv), :]                                   # (tkv, C)  bf16

        # energy[i, j] = sum_c q[i, c] * k[j, c]   (only the small K tile is contracted "T")
        s = jax.lax.dot_general(q, k, (((1,), (1,)), ((), ())),
                                preferred_element_type=jnp.float32)       # (tq, tkv) f32
        if n_valid < n_kv_pad:  # static: masking only emitted when spatial padding exists
            col = start + jax.lax.broadcasted_iota(jnp.int32, (1, tkv), 1)
            s = jnp.where(col < n_valid, s, -jnp.inf)

        # ---- online softmax update (f32 statistics)
        m_new = jnp.maximum(m_prev, jnp.max(s, axis=-1, keepdims=True))
        alpha = jnp.exp(m_prev - m_new)
        p = jnp.exp(s - m_new)                                            # (tq, tkv) f32
        l_new = alpha * l_prev + jnp.sum(p, axis=-1, keepdims=True)
        acc_sc[...] = alpha * acc_sc[...] + jnp.dot(
            p.astype(jnp.bfloat16), v, preferred_element_type=jnp.float32)
        return m_new, l_new

    _m_f, l_f = jax.lax.fori_loop(0, n_chunks, body, (m0, l0))

    # ---- finalize: normalize, gamma-scale, residual add (residual stays f32)
    out = acc_sc[...] * pl.reciprocal(l_f, approx=True)
    o_ref[...] = (gamma_ref[0] * out + x_ref[...]).astype(o_ref.dtype)


def _round_up(n, m):
    return ((n + m - 1) // m) * m


def _vmem_limit_bytes():
    try:
        cap = pltpu.get_tpu_info().vmem_capacity_bytes
    except Exception:
        cap = 64 * 1024 * 1024  # conservative default (v7x per-core VMEM)
    return int(cap * 3 // 4)


def pam_forward(x, wq, bq, wk, bk, wv, bv, gamma, *, tq=512, tkv=512):
    """x: (B, C, H, W) f32. 1x1-conv weights squeezed to 2D: wq/wk (Cq, C), wv (C, C)."""
    B, C, H, W = x.shape
    N = H * W
    Cq = wq.shape[0]

    # Tile sizes: multiples of 8, capped at N; pad spatial dim so tiles divide evenly.
    tq = _round_up(min(tq, N), 8)
    tkv = _round_up(min(tkv, N), 8)
    nq_pad = _round_up(N, tq)
    nkv_pad = _round_up(N, tkv)
    nq = nq_pad // tq

    xf = x.reshape(B, C, N)                                    # (B, C, N) f32
    x_nc = xf.transpose(0, 2, 1)                               # (B, N, C) f32: query + residual stream

    # K/V projections hoisted out of the kernel (once per batch element, stored bf16);
    # the NCHW -> (B, N, Cout) transpose is folded into the einsum output layout.
    k_all = (jnp.einsum('oc,bcn->bno', wk, xf) + bk).astype(jnp.bfloat16)    # (B, N, Cq)
    v_all = (jnp.einsum('oc,bcn->bno', wv, xf) + bv).astype(jnp.bfloat16)    # (B, N, C)

    # Padded key columns are masked to -inf in-kernel; padded query rows are sliced off.
    x_nc = jnp.pad(x_nc, ((0, 0), (0, nq_pad - N), (0, 0)))
    k_all = jnp.pad(k_all, ((0, 0), (0, nkv_pad - N), (0, 0)))
    v_all = jnp.pad(v_all, ((0, 0), (0, nkv_pad - N), (0, 0)))

    wq_t = wq.T.astype(jnp.bfloat16)                           # (C, Cq)
    bq2 = bq.reshape(1, Cq).astype(jnp.float32)
    gamma1 = jnp.asarray(gamma, jnp.float32).reshape(1)

    kernel = functools.partial(pam_kernel, tkv=tkv, n_valid=N)

    # TODO(synk): fall back to streaming K/V tiles through a third grid axis when
    # nkv_pad * (C + Cq) * 2 bytes exceeds the per-core VMEM budget (very large H*W).
    out_nc = pl.pallas_call(
        kernel,
        out_shape=jax.ShapeDtypeStruct((B, nq_pad, C), jnp.float32),
        grid=(B, nq),
        in_specs=[
            pl.BlockSpec(memory_space=pltpu.SMEM),                          # gamma (1,)
            pl.BlockSpec((None, tq, C), lambda b, qi: (b, qi, 0)),          # x query/residual tile (f32)
            pl.BlockSpec((None, nkv_pad, Cq), lambda b, qi: (b, 0, 0)),     # K, whole batch elem (bf16)
            pl.BlockSpec((None, nkv_pad, C), lambda b, qi: (b, 0, 0)),      # V, whole batch elem (bf16)
            pl.BlockSpec((C, Cq), lambda b, qi: (0, 0)),                    # Wq^T (bf16)
            pl.BlockSpec((1, Cq), lambda b, qi: (0, 0)),                    # bq (f32)
        ],
        out_specs=pl.BlockSpec((None, tq, C), lambda b, qi: (b, qi, 0)),
        scratch_shapes=[
            pltpu.VMEM((tq, C), jnp.float32),    # output accumulator
        ],
        compiler_params=pltpu.CompilerParams(
            dimension_semantics=("parallel", "parallel"),
            vmem_limit_bytes=_vmem_limit_bytes(),
        ),
    )(gamma1, x_nc, k_all, v_all, wq_t, bq2)

    return out_nc[:, :N, :].transpose(0, 2, 1).reshape(B, C, H, W)


def pam_reference(x, wq, bq, wk, bk, wv, bv, gamma):
    """Pure-JAX f32 reference mirroring the PyTorch forward exactly."""
    B, C, H, W = x.shape
    N = H * W
    xf = x.reshape(B, C, N)
    q = jnp.einsum('oc,bcn->bon', wq, xf) + bq[None, :, None]   # (B, Cq, N)
    k = jnp.einsum('oc,bcn->bon', wk, xf) + bk[None, :, None]   # (B, Cq, N)
    v = jnp.einsum('oc,bcn->bon', wv, xf) + bv[None, :, None]   # (B, C,  N)
    energy = jnp.einsum('bci,bcj->bij', q, k)                   # (B, N, N)
    att = jax.nn.softmax(energy, axis=-1)
    out = jnp.einsum('bcj,bij->bci', v, att)                    # (B, C, N)
    return (gamma * out + xf).reshape(B, C, H, W)


if __name__ == "__main__":
    key = jax.random.PRNGKey(0)

    def make_inputs(k, B, C, H, W):
        Cq = C // 8
        ks = jax.random.split(k, 7)
        x = jax.random.normal(ks[0], (B, C, H, W), dtype=jnp.float32)
        wq = jax.random.normal(ks[1], (Cq, C), dtype=jnp.float32) * 0.1
        bq = jax.random.normal(ks[2], (Cq,), dtype=jnp.float32) * 0.1
        wk = jax.random.normal(ks[3], (Cq, C), dtype=jnp.float32) * 0.1
        bk = jax.random.normal(ks[4], (Cq,), dtype=jnp.float32) * 0.1
        wv = jax.random.normal(ks[5], (C, C), dtype=jnp.float32) * 0.1
        bv = jax.random.normal(ks[6], (C,), dtype=jnp.float32) * 0.1
        return x, wq, bq, wk, bk, wv, bv

    # gamma is zero-init in the module; use a nonzero value so the attention path is
    # actually exercised (still deterministic).
    gamma = jnp.float32(0.5)
    key1, key2 = jax.random.split(key)

    # Case 1: B=2, C=16, 16x16 spatial (N=256). Small tiles so the multi-query-tile grid
    # and the in-kernel kv-chunk loop are both exercised.
    args1 = make_inputs(key1, 2, 16, 16, 16)
    out1 = jax.block_until_ready(pam_forward(*args1, gamma, tq=128, tkv=64))
    ref1 = pam_reference(*args1, gamma)
    assert out1.shape == args1[0].shape
    # Tolerance loosened vs pure-f32: bf16 matmul operands (f32 accumulation, f32 softmax
    # statistics) and the approx EUP reciprocal for the softmax denominator.
    assert jnp.allclose(out1, ref1, atol=2e-2, rtol=2e-2), "case 1 mismatch vs reference"

    # Case 2: B=1, C=16, 9x9 spatial (N=81, not a multiple of 8) to exercise the
    # spatial-padding + masked-key-column path.
    args2 = make_inputs(key2, 1, 16, 9, 9)
    out2 = jax.block_until_ready(pam_forward(*args2, gamma, tq=32, tkv=32))
    ref2 = pam_reference(*args2, gamma)
    assert out2.shape == args2[0].shape
    assert jnp.allclose(out2, ref2, atol=2e-2, rtol=2e-2), "case 2 mismatch vs reference"

    print("KERNEL_OK")
</pallas_src>

<mosaic_0001>
module attributes {stable_mosaic.version = 11 : i64} {
  func.func @pam_kernel(%arg0: i32, %arg1: i32, %arg2: memref<1xf32, #tpu.memory_space<smem>>, %arg3: memref<1x128x16xf32, #tpu.memory_space<vmem>>, %arg4: memref<1x256x2xbf16, #tpu.memory_space<vmem>>, %arg5: memref<1x256x16xbf16, #tpu.memory_space<vmem>>, %arg6: memref<16x2xbf16, #tpu.memory_space<vmem>>, %arg7: memref<1x2xf32, #tpu.memory_space<vmem>>, %arg8: memref<1x128x16xf32, #tpu.memory_space<vmem>>, %arg9: memref<128x16xf32, #tpu.memory_space<vmem>>) attributes {dimension_semantics = [#tpu.dimension_semantics<parallel>, #tpu.dimension_semantics<parallel>], iteration_bounds = array<i64: 2, 2>, scalar_prefetch = 0 : i64, scratch_operands = 1 : i64, tpu.core_type = #tpu.core_type<tc>, window_params = [{transform_indices = @transform_0, window_bounds = array<i64: 1>}, {transform_indices = @transform_1, window_bounds = array<i64: 1, 128, 16>}, {transform_indices = @transform_2, window_bounds = array<i64: 1, 256, 2>}, {transform_indices = @transform_3, window_bounds = array<i64: 1, 256, 16>}, {pipeline_mode = #tpu.pipeline_mode<synchronous>, transform_indices = @transform_4, window_bounds = array<i64: 16, 2>}, {pipeline_mode = #tpu.pipeline_mode<synchronous>, transform_indices = @transform_5, window_bounds = array<i64: 1, 2>}, {transform_indices = @transform_6, window_bounds = array<i64: 1, 128, 16>}]} {
    %c0 = arith.constant 0 : index
    %c0_0 = arith.constant 0 : index
    %c0_1 = arith.constant 0 : index
    %0 = vector.load %arg3[%c0, %c0_0, %c0_1] : memref<1x128x16xf32, #tpu.memory_space<vmem>>, vector<1x128x16xf32>
    %1 = vector.shape_cast %0 : vector<1x128x16xf32> to vector<128x16xf32>
    %2 = arith.truncf %1 : vector<128x16xf32> to vector<128x16xbf16>
    %c0_2 = arith.constant 0 : index
    %c0_3 = arith.constant 0 : index
    %3 = vector.load %arg6[%c0_2, %c0_3] : memref<16x2xbf16, #tpu.memory_space<vmem>>, vector<16x2xbf16>
    %cst = arith.constant dense<0.000000e+00> : vector<128x2xf32>
    %4 = tpu.matmul %2, %3, %cst {dimension_numbers = #tpu.dot_dimension_numbers<[1], [0], [0], [1], [0, 0, 1, 1], [], []>} : vector<128x16xbf16>, vector<16x2xbf16>, vector<128x2xf32> -> vector<128x2xf32>
    %c0_4 = arith.constant 0 : index
    %c0_5 = arith.constant 0 : index
    %5 = vector.load %arg7[%c0_4, %c0_5] : memref<1x2xf32, #tpu.memory_space<vmem>>, vector<1x2xf32>
    %6 = vector.broadcast %5 : vector<1x2xf32> to vector<128x2xf32>
    %7 = arith.addf %4, %6 : vector<128x2xf32>
    %8 = arith.truncf %7 : vector<128x2xf32> to vector<128x2xbf16>
    %cst_6 = arith.constant 0.000000e+00 : f32
    %9 = vector.broadcast %cst_6 : f32 to vector<128x16xf32>
    %c0_7 = arith.constant 0 : index
    %c0_8 = arith.constant 0 : index
    %10 = vector.load %arg9[%c0_7, %c0_8] : memref<128x16xf32, #tpu.memory_space<vmem>>, vector<128x16xf32>
    tpu.vector_store %arg9[%c0_7, %c0_8], %9 {strides = array<i32>} : memref<128x16xf32, #tpu.memory_space<vmem>>, vector<128x16xf32>,
    %cst_9 = arith.constant 0xFF800000 : f32
    %11 = vector.broadcast %cst_9 : f32 to vector<128x1xf32>
    %cst_10 = arith.constant 0.000000e+00 : f32
    %12 = vector.broadcast %cst_10 : f32 to vector<128x1xf32>
    %c0_i32 = arith.constant 0 : i32
    %c4_i32 = arith.constant 4 : i32
    %13 = arith.addi %c0_i32, %c4_i32 : i32
    %c1_i32 = arith.constant 1 : i32
    %14:2 = scf.for %arg10 = %c0_i32 to %13 step %c1_i32 iter_args(%arg11 = %11, %arg12 = %12) -> (vector<128x1xf32>, vector<128x1xf32>)  : i32 {
      %c64_i32 = arith.constant 64 : i32
      %28 = arith.muli %arg10, %c64_i32 : i32
      %29 = tpu.assume_multiple %28, 64 : i32
      %c0_21 = arith.constant 0 : index
      %30 = arith.index_cast %29 : i32 to index
      %c0_22 = arith.constant 0 : index
      %31 = vector.load %arg4[%c0_21, %30, %c0_22] : memref<1x256x2xbf16, #tpu.memory_space<vmem>>, vector<1x64x2xbf16>
      %32 = vector.shape_cast %31 : vector<1x64x2xbf16> to vector<64x2xbf16>
      %c0_23 = arith.constant 0 : index
      %33 = arith.index_cast %29 : i32 to index
      %c0_24 = arith.constant 0 : index
      %34 = vector.load %arg5[%c0_23, %33, %c0_24] : memref<1x256x16xbf16, #tpu.memory_space<vmem>>, vector<1x64x16xbf16>
      %35 = vector.shape_cast %34 : vector<1x64x16xbf16> to vector<64x16xbf16>
      %cst_25 = arith.constant dense<0.000000e+00> : vector<128x64xf32>
      %36 = tpu.matmul %8, %32, %cst_25 {dimension_numbers = #tpu.dot_dimension_numbers<[1], [1], [0], [0], [0, 0, 1, 0], [], []>} : vector<128x2xbf16>, vector<64x2xbf16>, vector<128x64xf32> -> vector<128x64xf32>
      %cst_26 = arith.constant dense<0xFF800000> : vector<128xf32>
      %37 = vector.multi_reduction <maximumf>, %36, %cst_26 [1] : vector<128x64xf32> to vector<128xf32>
      %38 = vector.shape_cast %37 : vector<128xf32> to vector<128x1xf32>
      %39 = arith.maximumf %arg11, %38 : vector<128x1xf32>
      %40 = arith.subf %arg11, %39 : vector<128x1xf32>
      %41 = math.exp %40 : vector<128x1xf32>
      %42 = vector.broadcast %39 : vector<128x1xf32> to vector<128x64xf32>
      %43 = arith.subf %36, %42 : vector<128x64xf32>
      %44 = math.exp %43 : vector<128x64xf32>
      %45 = arith.mulf %41, %arg12 : vector<128x1xf32>
      %cst_27 = arith.constant dense<0.000000e+00> : vector<128xf32>
      %46 = vector.multi_reduction <add>, %44, %cst_27 [1] : vector<128x64xf32> to vector<128xf32>
      %47 = vector.shape_cast %46 : vector<128xf32> to vector<128x1xf32>
      %48 = arith.addf %45, %47 : vector<128x1xf32>
      %c0_28 = arith.constant 0 : index
      %c0_29 = arith.constant 0 : index
      %49 = vector.load %arg9[%c0_28, %c0_29] : memref<128x16xf32, #tpu.memory_space<vmem>>, vector<128x16xf32>
      %50 = vector.broadcast %41 : vector<128x1xf32> to vector<128x16xf32>
      %51 = arith.mulf %50, %49 : vector<128x16xf32>
      %52 = arith.truncf %44 : vector<128x64xf32> to vector<128x64xbf16>
      %cst_30 = arith.constant dense<0.000000e+00> : vector<128x16xf32>
      %53 = tpu.matmul %52, %35, %cst_30 {dimension_numbers = #tpu.dot_dimension_numbers<[1], [0], [0], [1], [0, 0, 1, 1], [], []>} : vector<128x64xbf16>, vector<64x16xbf16>, vector<128x16xf32> -> vector<128x16xf32>
      %54 = arith.addf %51, %53 : vector<128x16xf32>
      %c0_31 = arith.constant 0 : index
      %c0_32 = arith.constant 0 : index
      %55 = vector.load %arg9[%c0_31, %c0_32] : memref<128x16xf32, #tpu.memory_space<vmem>>, vector<128x16xf32>
      tpu.vector_store %arg9[%c0_31, %c0_32], %54 {strides = array<i32>} : memref<128x16xf32, #tpu.memory_space<vmem>>, vector<128x16xf32>,
      scf.yield %39, %48 : vector<128x1xf32>, vector<128x1xf32>
    }
    %c4_i32_11 = arith.constant 4 : i32
    %c0_12 = arith.constant 0 : index
    %c0_13 = arith.constant 0 : index
    %15 = vector.load %arg9[%c0_12, %c0_13] : memref<128x16xf32, #tpu.memory_space<vmem>>, vector<128x16xf32>
    %16 = tpu.reciprocal %14#1 {approx = true} : vector<128x1xf32> -> vector<128x1xf32>
    %17 = vector.broadcast %16 : vector<128x1xf32> to vector<128x16xf32>
    %18 = arith.mulf %15, %17 : vector<128x16xf32>
    %c0_14 = arith.constant 0 : index
    %19 = memref.load %arg2[%c0_14] : memref<1xf32, #tpu.memory_space<smem>>
    %20 = vector.broadcast %19 : f32 to vector<128x16xf32>
    %21 = arith.mulf %20, %18 : vector<128x16xf32>
    %c0_15 = arith.constant 0 : index
    %c0_16 = arith.constant 0 : index
    %c0_17 = arith.constant 0 : index
    %22 = vector.load %arg3[%c0_15, %c0_16, %c0_17] : memref<1x128x16xf32, #tpu.memory_space<vmem>>, vector<1x128x16xf32>
    %23 = vector.shape_cast %22 : vector<1x128x16xf32> to vector<128x16xf32>
    %24 = arith.addf %21, %23 : vector<128x16xf32>
    %c0_18 = arith.constant 0 : index
    %c0_19 = arith.constant 0 : index
    %c0_20 = arith.constant 0 : index
    %25 = vector.load %arg8[%c0_18, %c0_19, %c0_20] : memref<1x128x16xf32, #tpu.memory_space<vmem>>, vector<1x128x16xf32>
    %26 = vector.shape_cast %25 : vector<1x128x16xf32> to vector<128x16xf32>
    %27 = vector.shape_cast %24 : vector<128x16xf32> to vector<1x128x16xf32>
    tpu.vector_store %arg8[%c0_18, %c0_19, %c0_20], %27 {strides = array<i32>} : memref<1x128x16xf32, #tpu.memory_space<vmem>>, vector<1x128x16xf32>,
    return
  }
  func.func @transform_0(%arg0: i32, %arg1: i32) -> i32 {
    %c0_i32 = arith.constant 0 : i32
    %c0_i32_0 = arith.constant 0 : i32
    return %c0_i32 : i32
  }
  func.func @transform_1(%arg0: i32, %arg1: i32) -> (i32, i32, i32) {
    %c0_i32 = arith.constant 0 : i32
    %c0_i32_0 = arith.constant 0 : i32
    return %arg0, %arg1, %c0_i32 : i32, i32, i32
  }
  func.func @transform_2(%arg0: i32, %arg1: i32) -> (i32, i32, i32) {
    %c0_i32 = arith.constant 0 : i32
    %c0_i32_0 = arith.constant 0 : i32
    %c0_i32_1 = arith.constant 0 : i32
    return %arg0, %c0_i32, %c0_i32_0 : i32, i32, i32
  }
  func.func @transform_3(%arg0: i32, %arg1: i32) -> (i32, i32, i32) {
    %c0_i32 = arith.constant 0 : i32
    %c0_i32_0 = arith.constant 0 : i32
    %c0_i32_1 = arith.constant 0 : i32
    return %arg0, %c0_i32, %c0_i32_0 : i32, i32, i32
  }
  func.func @transform_4(%arg0: i32, %arg1: i32) -> (i32, i32) {
    %c0_i32 = arith.constant 0 : i32
    %c0_i32_0 = arith.constant 0 : i32
    %c0_i32_1 = arith.constant 0 : i32
    return %c0_i32, %c0_i32_0 : i32, i32
  }
  func.func @transform_5(%arg0: i32, %arg1: i32) -> (i32, i32) {
    %c0_i32 = arith.constant 0 : i32
    %c0_i32_0 = arith.constant 0 : i32
    %c0_i32_1 = arith.constant 0 : i32
    return %c0_i32, %c0_i32_0 : i32, i32
  }
  func.func @transform_6(%arg0: i32, %arg1: i32) -> (i32, i32, i32) {
    %c0_i32 = arith.constant 0 : i32
    %c0_i32_0 = arith.constant 0 : i32
    return %arg0, %arg1, %c0_i32 : i32, i32, i32
  }
}

</mosaic_0001>

<llo_original>
// kernel: tpu_custom_call.1
$region0: #{tpu_custom_call.1}
  #allocation0 [shape = 'u32[]', space=smem, size = 0x4, offset = 0x4, fixed_abs, tag = 'smem constant byte address 0x4 - core index']
  #allocation1 [shape = 'u32[144,128]{1,0:T(1,128)}', space=vmem, size = 0x12000, scoped, tag = 'internal scratch']
  #allocation2 [shape = 'f32[128,16]{1,0:T(8,128)}', space=vmem, size = 0x10000, scoped, tag = 'scratch operand']
  #allocation3 [shape = 'f32[1]{0:T(128)S(6)}', space=smem, size = 0x200, scoped, tag = 'scoped memory for tpu_custom_call.1']
  %s0 = inlined_call_operand.<no memory space> [shape: f32[1], index: 0, kind: input, shape index: {}]
  %s1 = inlined_call_operand.vmem [shape: f32[2,256,16], index: 1, kind: input, shape index: {}]
  %s2 = inlined_call_operand.vmem [shape: bf16[2,256,2], index: 2, kind: input, shape index: {}]
  %s3 = inlined_call_operand.vmem [shape: bf16[2,256,16], index: 3, kind: input, shape index: {}]
  %s4 = inlined_call_operand.vmem [shape: bf16[16,2], index: 4, kind: input, shape index: {}]
  %s5 = inlined_call_operand.vmem [shape: f32[1,2], index: 5, kind: input, shape index: {}]
  %s6 = inlined_call_operand.vmem [shape: f32[2,256,16], index: 6, kind: output, shape index: {}]
  %s7 = sld [smem:[#allocation0]]
  $region64: #{tpu_custom_call.1} parent=0
    _
  %s9 = ssub.s32 1, %s7
  %s10 = scalar_select 0, %s9, %s7
  %11 = sst [smem:[#allocation3]] %s0
  loop: start=0, step=1, limit=6
  $region2: #{tpu_custom_call.1} parent=0 // loop_pre_header
    _
  $region3: #{tpu_custom_call.1} parent=0 // loop_header
    %s13 = sphi 0, %s17
    %p14 = scmp.ge.s32.totalorder %s13, 6
    %s20 = sphi 0, %s32
    %s21 = sphi 0, %s28
    %s22 = sphi 0, %s20
    %s23 = sphi 0, %s21
    %s24 = sphi 0, %s22
    %s25 = sphi 0, %s23
    %s33 = sphi 0, %s33
    %s35 = sphi 0, %s33
    %s36 = sphi 0, %s35
    %s50 = sphi 0, %s36
    %s58 = sphi 0, %s60
    %s61 = sphi 0, %s58
    %s62 = sphi 0, %s61
    %s78 = sphi 0, %s62
    %s84 = sphi 0, %s86
    %s87 = sphi 0, %s84
    %s88 = sphi 0, %s87
    %s104 = sphi 0, %s88
    %s110 = sphi 0, %s112
    %s113 = sphi 0, %s110
    %s114 = sphi 0, %s113
    %s130 = sphi 0, %s114
    %s134 = sphi 0, %s134
    %s136 = sphi 0, %s134
    %s137 = sphi 0, %s136
    %s151 = sphi 0, %s137
    %s155 = sphi 0, %s155
    %s157 = sphi 0, %s155
    %s158 = sphi 0, %s157
    %s172 = sphi 0, %s158
    %s180 = sphi 0, %s182
    %s183 = sphi 0, %s180
    %s184 = sphi 0, %s183
    %s200 = sphi 0, %s184
  $region4: #{tpu_custom_call.1} parent=0 // loop_header_branch
    %16 = sbr.rel (%p14) target = $region8
  $region5: #{tpu_custom_call.1} parent=0 // loop_body
    %s18 = ssub.s32 %s13, 1
    %s19 = ssub.s32 %s13, 2
    %s26 = sadd.s32 1, %s21
    %p27 = scmp.ge.s32.totalorder %s26, 2
    %s28 = scalar_select %p27, 0, %s26
    %s29 = sadd.s32 1, %s20
    %s30 = scalar_select %p27, %s29, %s20
    %p31 = scmp.ge.s32.totalorder %s30, 2
    %s32 = scalar_select %p31, 0, %s30
    %s34 = sadd.s32 %s33, 1
    %p37 = scmp.eq.s32.totalorder %s13, 3
    %p38 = scmp.ne.s32.totalorder %s33, %s35
    %p39 = scmp.eq.s32.totalorder %s13, 0
    %p40 = por %p38, %p39
    %p41 = scmp.ne.s32.totalorder %s33, %s35
    %p42 = scmp.eq.s32.totalorder %s18, 3
    %p43 = por %p41, %p42
    %p44 = scmp.ne.s32.totalorder %s35, %s36
    %p45 = scmp.eq.s32.totalorder %s18, 0
    %p46 = por %p44, %p45
    %p47 = scmp.ne.s32.totalorder %s35, %s36
    %p48 = scmp.eq.s32.totalorder %s19, 3
    %p49 = por %p47, %p48
    %p51 = scmp.ne.s32.totalorder %s36, %s50
    %p52 = scmp.eq.s32.totalorder %s19, 0
    %p53 = por %p51, %p52
    %s54 = ssub.s32 %s20, %s32
    %s55 = ssub.s32 %s21, %s28
    %s56 = sor.u32 %s54, %s55
    %p57 = scmp.eq.s32.totalorder %s56, 0
    %s59 = sadd.s32 %s58, 1
    %s60 = scalar_select %p57, %s58, %s59
    %p63 = pneg %p57
    %p64 = scmp.eq.s32.totalorder %s13, 3
    %p65 = por %p63, %p64
    %p66 = scmp.ne.s32.totalorder %s58, %s61
    %p67 = scmp.eq.s32.totalorder %s13, 0
    %p68 = por %p66, %p67
    %p69 = scmp.ne.s32.totalorder %s58, %s61
    %p70 = scmp.eq.s32.totalorder %s18, 3
    %p71 = por %p69, %p70
    %p72 = scmp.ne.s32.totalorder %s61, %s62
    %p73 = scmp.eq.s32.totalorder %s18, 0
    %p74 = por %p72, %p73
    %p75 = scmp.ne.s32.totalorder %s61, %s62
    %p76 = scmp.eq.s32.totalorder %s19, 3
    %p77 = por %p75, %p76
    %p79 = scmp.ne.s32.totalorder %s62, %s78
    %p80 = scmp.eq.s32.totalorder %s19, 0
    %p81 = por %p79, %p80
    %s82 = ssub.s32 %s20, %s32
    %p83 = scmp.eq.s32.totalorder %s82, 0
    %s85 = sadd.s32 %s84, 1
    %s86 = scalar_select %p83, %s84, %s85
    %p89 = pneg %p83
    %p90 = scmp.eq.s32.totalorder %s13, 3
    %p91 = por %p89, %p90
    %p92 = scmp.ne.s32.totalorder %s84, %s87
    %p93 = scmp.eq.s32.totalorder %s13, 0
    %p94 = por %p92, %p93
    %p95 = scmp.ne.s32.totalorder %s84, %s87
    %p96 = scmp.eq.s32.totalorder %s18, 3
    %p97 = por %p95, %p96
    %p98 = scmp.ne.s32.totalorder %s87, %s88
    %p99 = scmp.eq.s32.totalorder %s18, 0
    %p100 = por %p98, %p99
    %p101 = scmp.ne.s32.totalorder %s87, %s88
    %p102 = scmp.eq.s32.totalorder %s19, 3
    %p103 = por %p101, %p102
    %p105 = scmp.ne.s32.totalorder %s88, %s104
    %p106 = scmp.eq.s32.totalorder %s19, 0
    %p107 = por %p105, %p106
    %s108 = ssub.s32 %s20, %s32
    %p109 = scmp.eq.s32.totalorder %s108, 0
    %s111 = sadd.s32 %s110, 1
    %s112 = scalar_select %p109, %s110, %s111
    %p115 = pneg %p109
    %p116 = scmp.eq.s32.totalorder %s13, 3
    %p117 = por %p115, %p116
    %p118 = scmp.ne.s32.totalorder %s110, %s113
    %p119 = scmp.eq.s32.totalorder %s13, 0
    %p120 = por %p118, %p119
    %p121 = scmp.ne.s32.totalorder %s110, %s113
    %p122 = scmp.eq.s32.totalorder %s18, 3
    %p123 = por %p121, %p122
    %p124 = scmp.ne.s32.totalorder %s113, %s114
    %p125 = scmp.eq.s32.totalorder %s18, 0
    %p126 = por %p124, %p125
    %p127 = scmp.ne.s32.totalorder %s113, %s114
    %p128 = scmp.eq.s32.totalorder %s19, 3
    %p129 = por %p127, %p128
    %p131 = scmp.ne.s32.totalorder %s114, %s130
    %p132 = scmp.eq.s32.totalorder %s19, 0
    %p133 = por %p131, %p132
    %s135 = sadd.s32 %s134, 1
    %p138 = scmp.eq.s32.totalorder %s13, 3
    %p139 = scmp.ne.s32.totalorder %s134, %s136
    %p140 = scmp.eq.s32.totalorder %s13, 0
    %p141 = por %p139, %p140
    %p142 = scmp.ne.s32.totalorder %s134, %s136
    %p143 = scmp.eq.s32.totalorder %s18, 3
    %p144 = por %p142, %p143
    %p145 = scmp.ne.s32.totalorder %s136, %s137
    %p146 = scmp.eq.s32.totalorder %s18, 0
    %p147 = por %p145, %p146
    %p148 = scmp.ne.s32.totalorder %s136, %s137
    %p149 = scmp.eq.s32.totalorder %s19, 3
    %p150 = por %p148, %p149
    %p152 = scmp.ne.s32.totalorder %s137, %s151
    %p153 = scmp.eq.s32.totalorder %s19, 0
    %p154 = por %p152, %p153
    %s156 = sadd.s32 %s155, 1
    %p159 = scmp.eq.s32.totalorder %s13, 3
    %p160 = scmp.ne.s32.totalorder %s155, %s157
    %p161 = scmp.eq.s32.totalorder %s13, 0
    %p162 = por %p160, %p161
    %p163 = scmp.ne.s32.totalorder %s155, %s157
    %p164 = scmp.eq.s32.totalorder %s18, 3
    %p165 = por %p163, %p164
    %p166 = scmp.ne.s32.totalorder %s157, %s158
    %p167 = scmp.eq.s32.totalorder %s18, 0
    %p168 = por %p166, %p167
    %p169 = scmp.ne.s32.totalorder %s157, %s158
    %p170 = scmp.eq.s32.totalorder %s19, 3
    %p171 = por %p169, %p170
    %p173 = scmp.ne.s32.totalorder %s158, %s172
    %p174 = scmp.eq.s32.totalorder %s19, 0
    %p175 = por %p173, %p174
    %s176 = ssub.s32 %s20, %s32
    %s177 = ssub.s32 %s21, %s28
    %s178 = sor.u32 %s176, %s177
    %p179 = scmp.eq.s32.totalorder %s178, 0
    %s181 = sadd.s32 %s180, 1
    %s182 = scalar_select %p179, %s180, %s181
    %p185 = pneg %p179
    %p186 = scmp.eq.s32.totalorder %s13, 3
    %p187 = por %p185, %p186
    %p188 = scmp.ne.s32.totalorder %s180, %s183
    %p189 = scmp.eq.s32.totalorder %s13, 0
    %p190 = por %p188, %p189
    %p191 = scmp.ne.s32.totalorder %s180, %s183
    %p192 = scmp.eq.s32.totalorder %s18, 3
    %p193 = por %p191, %p192
    %p194 = scmp.ne.s32.totalorder %s183, %s184
    %p195 = scmp.eq.s32.totalorder %s18, 0
    %p196 = por %p194, %p195
    %p197 = scmp.ne.s32.totalorder %s183, %s184
    %p198 = scmp.eq.s32.totalorder %s19, 3
    %p199 = por %p197, %p198
    %p201 = scmp.ne.s32.totalorder %s184, %s200
    %p202 = scmp.eq.s32.totalorder %s19, 0
    %p203 = por %p201, %p202
    %p204 = scmp.le.s32.totalorder 1, %s13
    %p205 = scmp.lt.s32.totalorder %s13, 5
    %p206 = pnand %p204, %p205
    %p207 = pneg %p206
    // Predicated region
    $region9: #{tpu_custom_call.1} parent=5 // pred_check
      _
    $region10: #{tpu_custom_call.1} parent=5 // pred_check_branch
      %209 = sbr.rel (%p206) target = $region12
    $region11: #{tpu_custom_call.1} parent=5 // pred_region
      %s210 = ssub.s32 %s13, 1
      // Predicated region
      $region13: #{tpu_custom_call.1} parent=11 // pred_check
        %p211 = pneg %p46
      $region14: #{tpu_custom_call.1} parent=11 // pred_check_branch
        %213 = sbr.rel (%p211) target = $region16
      $region15: #{tpu_custom_call.1} parent=11 // pred_region
        _
      $region16: #{tpu_custom_call.1} parent=11 // pred_fallthru
        _
      // Predicated region
      $region17: #{tpu_custom_call.1} parent=11 // pred_check
        %p214 = pneg %p147
      $region18: #{tpu_custom_call.1} parent=11 // pred_check_branch
        %216 = sbr.rel (%p214) target = $region20
      $region19: #{tpu_custom_call.1} parent=11 // pred_region
        _
      $region20: #{tpu_custom_call.1} parent=11 // pred_fallthru
        _
      // Predicated region
      $region21: #{tpu_custom_call.1} parent=11 // pred_check
        %p217 = pneg %p168
      $region22: #{tpu_custom_call.1} parent=11 // pred_check_branch
        %219 = sbr.rel (%p217) target = $region24
      $region23: #{tpu_custom_call.1} parent=11 // pred_region
        _
      $region24: #{tpu_custom_call.1} parent=11 // pred_fallthru
        _
    $region12: #{tpu_custom_call.1} parent=5 // pred_fallthru
      _
    %p220 = scmp.lt.s32.totalorder %s13, 4
    // Predicated region
    $region25: #{tpu_custom_call.1} parent=5 // pred_check
      %p221 = pneg %p220
    $region26: #{tpu_custom_call.1} parent=5 // pred_check_branch
      %223 = sbr.rel (%p221) target = $region28
    $region27: #{tpu_custom_call.1} parent=5 // pred_region
      // Predicated region
      $region29: #{tpu_custom_call.1} parent=27 // pred_check
        %p224 = pneg %p68
      $region30: #{tpu_custom_call.1} parent=27 // pred_check_branch
        %226 = sbr.rel (%p224) target = $region32
      $region31: #{tpu_custom_call.1} parent=27 // pred_region
        %s227 = smul.u32 16, %s21
        %p228 = scmp.lt.s32.totalorder %s20, 1
        %s229 = scalar_select %p228, %s20, 1
        %p230 = scmp.lt.s32.totalorder %s227, 31
        %s231 = scalar_select %p230, %s227, 31
        %s232 = smul.addr %s229, 32
        %s233 = sadd.s32 %s231, %s232
        %s234 = smul.addr %s233, 8
        %s235 = scalar_lea.vmem %s1, %s234
        %s236 = smul.u32 16, %s21
      $region32: #{tpu_custom_call.1} parent=27 // pred_fallthru
        _
      // Predicated region
      $region33: #{tpu_custom_call.1} parent=27 // pred_check
        %p237 = pneg %p94
      $region34: #{tpu_custom_call.1} parent=27 // pred_check_branch
        %239 = sbr.rel (%p237) target = $region36
      $region35: #{tpu_custom_call.1} parent=27 // pred_region
        %p240 = scmp.lt.s32.totalorder %s20, 1
        %s241 = scalar_select %p240, %s20, 1
        %s242 = smul.addr %s241, 32
        %s243 = smul.addr %s242, 4
        %s244 = scalar_lea.vmem %s2, %s243
      $region36: #{tpu_custom_call.1} parent=27 // pred_fallthru
        _
      // Predicated region
      $region37: #{tpu_custom_call.1} parent=27 // pred_check
        %p245 = pneg %p120
      $region38: #{tpu_custom_call.1} parent=27 // pred_check_branch
        %247 = sbr.rel (%p245) target = $region40
      $region39: #{tpu_custom_call.1} parent=27 // pred_region
        %p248 = scmp.lt.s32.totalorder %s20, 1
        %s249 = scalar_select %p248, %s20, 1
        %s250 = smul.addr %s249, 32
        %s251 = smul.addr %s250, 4
        %s252 = scalar_lea.vmem %s3, %s251
      $region40: #{tpu_custom_call.1} parent=27 // pred_fallthru
        _
    $region28: #{tpu_custom_call.1} parent=5 // pred_fallthru
      _
    %p253 = scmp.le.s32.totalorder 1, %s13
    %p254 = scmp.lt.s32.totalorder %s13, 5
    %p255 = pnand %p253, %p254
    %p256 = pneg %p255
    // Predicated region
    $region41: #{tpu_custom_call.1} parent=5 // pred_check
      _
    $region42: #{tpu_custom_call.1} parent=5 // pred_check_branch
      %258 = sbr.rel (%p255) target = $region44
    $region43: #{tpu_custom_call.1} parent=5 // pred_region
      %s259 = ssub.s32 %s13, 1
      %p260 = pneg %p46
      %p261 = pneg %p43
      %s262 = smul.u32 16, %s23
      %p263 = scmp.lt.s32.totalorder %s22, 1
      %s264 = scalar_select %p263, %s22, 1
      %p265 = scmp.lt.s32.totalorder %s262, 31
      %s266 = scalar_select %p265, %s262, 31
      %s267 = smul.addr %s264, 32
      %s268 = sadd.s32 %s266, %s267
      %s269 = smul.addr %s268, 8
      %s270 = scalar_lea.vmem %s1, %s269
      %p271 = pneg %p74
      %p272 = pneg %p71
      %p273 = scmp.lt.s32.totalorder %s22, 1
      %s274 = scalar_select %p273, %s22, 1
      %s275 = smul.addr %s274, 32
      %s276 = smul.addr %s275, 4
      %s277 = scalar_lea.vmem %s2, %s276
      %p278 = pneg %p100
      %p279 = pneg %p97
      %p280 = scmp.lt.s32.totalorder %s22, 1
      %s281 = scalar_select %p280, %s22, 1
      %s282 = smul.addr %s281, 32
      %s283 = smul.addr %s282, 4
      %s284 = scalar_lea.vmem %s3, %s283
      %p285 = pneg %p126
      %p286 = pneg %p123
      %p287 = pneg %p147
      %p288 = pneg %p144
      %p289 = pneg %p168
      %p290 = pneg %p165
      %p291 = pneg %p196
      %p292 = pneg %p193
      %s293 = smul.u32 16, %s23
      %p294 = scmp.lt.s32.totalorder %s22, 1
      %s295 = scalar_select %p294, %s22, 1
      %p296 = scmp.lt.s32.totalorder %s293, 31
      %s297 = scalar_select %p296, %s293, 31
      %s298 = smul.addr %s295, 32
      %s299 = sadd.s32 %s297, %s298
      %s300 = smul.addr %s299, 8
      %s301 = scalar_lea.vmem %s6, %s300
      %s302 = smul.u32 16, %s23
      %p303 = scmp.lt.s32.totalorder %s22, 1
      %s304 = scalar_select %p303, %s22, 1
      %p305 = scmp.lt.s32.totalorder %s302, 31
      %s306 = scalar_select %p305, %s302, 31
      %s307 = smul.addr %s304, 32
      %s308 = sadd.s32 %s306, %s307
      %s309 = smul.addr %s308, 8
      %s310 = scalar_lea.vmem %s1, %s309
      %s311 = smul.u32 16, %s23
      %p312 = scmp.lt.s32.totalorder %s22, 1
      %s313 = scalar_select %p312, %s22, 1
      %s314 = smul.addr %s313, 32
      %s315 = smul.addr %s314, 4
      %s316 = scalar_lea.vmem %s2, %s315
      %p317 = scmp.lt.s32.totalorder %s22, 1
      %s318 = scalar_select %p317, %s22, 1
      %s319 = smul.addr %s318, 32
      %s320 = smul.addr %s319, 4
      %s321 = scalar_lea.vmem %s3, %s320
      %s322 = smul.u32 16, %s23
      %p323 = scmp.lt.s32.totalorder %s22, 1
      %s324 = scalar_select %p323, %s22, 1
      %p325 = scmp.lt.s32.totalorder %s322, 31
      %s326 = scalar_select %p325, %s322, 31
      %s327 = smul.addr %s324, 32
      %s328 = sadd.s32 %s326, %s327
      %s329 = smul.addr %s328, 8
      %s330 = scalar_lea.vmem %s6, %s329
      %s331 = smul.u32 16, %s23
      %v333 = vld [vmem:[%s310] sm:$0xff]
      %v334 = vld [vmem:[%s310 + $0x8] sm:$0xff]
      %v335 = vld [vmem:[%s310 + $0x10] sm:$0xff]
      %v336 = vld [vmem:[%s310 + $0x18] sm:$0xff]
      %v337 = vld [vmem:[%s310 + $0x20] sm:$0xff]
      %v338 = vld [vmem:[%s310 + $0x28] sm:$0xff]
      %v339 = vld [vmem:[%s310 + $0x30] sm:$0xff]
      %v340 = vld [vmem:[%s310 + $0x38] sm:$0xff]
      %v341 = vld [vmem:[%s310 + $0x40] sm:$0xff]
      %v342 = vld [vmem:[%s310 + $0x48] sm:$0xff]
      %v343 = vld [vmem:[%s310 + $0x50] sm:$0xff]
      %v344 = vld [vmem:[%s310 + $0x58] sm:$0xff]
      %v345 = vld [vmem:[%s310 + $0x60] sm:$0xff]
      %v346 = vld [vmem:[%s310 + $0x68] sm:$0xff]
      %v347 = vld [vmem:[%s310 + $0x70] sm:$0xff]
      %v348 = vld [vmem:[%s310 + $0x78] sm:$0xff]
      %v349 = vpack.c.bf16 %v334, %v333
      %v350 = vpack.c.bf16 %v336, %v335
      %v351 = vpack.c.bf16 %v338, %v337
      %v352 = vpack.c.bf16 %v340, %v339
      %v353 = vpack.c.bf16 %v342, %v341
      %v354 = vpack.c.bf16 %v344, %v343
      %v355 = vpack.c.bf16 %v346, %v345
      %v356 = vpack.c.bf16 %v348, %v347
      %v357 = vld [vmem:[%s4] sm:$0xf]
      %v358 = vld [vmem:[%s4 + $0x4] sm:$0xf]
      %v359 = vld [vmem:[%s5] sm:$0x1]
      %v361 = vlaneseq
      %v362 = vshrl.u32 %v361, 7
      %v363 = vsub.s32 0, %v362
      %v364 = vrot.slane %v359, %v363
      %v368 = vunpack.c.l.b16 %v357
      %v369 = vunpack.c.l.b16 %v358
      %v370 = vpack.c.b16 %v369, %v368
      %vm372 = vcmask 130048
      %v374 = vsel %vm372, %v349, 0
      %v377 = vsel %vm372, %v350, 0
      %v380 = vsel %vm372, %v351, 0
      %v383 = vsel %vm372, %v352, 0
      %v386 = vsel %vm372, %v353, 0
      %v389 = vsel %vm372, %v354, 0
      %v392 = vsel %vm372, %v355, 0
      %v395 = vsel %vm372, %v356, 0
      %397 = vmatprep.subr.bf16.mxu0 0
      %398 = vmatpush1.bf16.msra.mxu0 %v370
      %399 = vmatprep.subr.bf16.mxu0 0
      %400 = vmatpush1.bf16.msra.mxu0 0
      %401 = vmatprep.subr.bf16.mxu0 0
      %402 = vmatpush1.bf16.msra.mxu0 0
      %403 = vmatprep.subr.bf16.mxu0 0
      %404 = vmatpush1.bf16.msra.mxu0 0
      %405 = vmatprep.subr.bf16.mxu0 0
      %406 = vmatpush1.bf16.msra.mxu0 0
      %407 = vmatprep.subr.bf16.mxu0 0
      %408 = vmatpush1.bf16.msra.mxu0 0
      %409 = vmatprep.subr.bf16.mxu0 0
      %410 = vmatpush1.bf16.msra.mxu0 0
      %411 = vmatprep.subr.bf16.mxu0 0
      %412 = vmatpush1.bf16.msra.mxu0 0
      %413 = vmatprep.subr.bf16.mxu0 0
      %414 = vmatpush1.bf16.msra.mxu0 0
      %415 = vmatprep.subr.bf16.mxu0 0
      %416 = vmatpush1.bf16.msra.mxu0 0
      %417 = vmatprep.subr.bf16.mxu0 0
      %418 = vmatpush1.bf16.msra.mxu0 0
      %419 = vmatprep.subr.bf16.mxu0 0
      %420 = vmatpush1.bf16.msra.mxu0 0
      %421 = vmatprep.subr.bf16.mxu0 0
      %422 = vmatpush1.bf16.msra.mxu0 0
      %423 = vmatprep.subr.bf16.mxu0 0
      %424 = vmatpush1.bf16.msra.mxu0 0
      %425 = vmatprep.subr.bf16.mxu0 0
      %426 = vmatpush1.bf16.msra.mxu0 0
      %427 = vmatprep.subr.bf16.mxu0 0
      %428 = vmatpush1.bf16.msra.mxu0 0
      %429 = vmatprep.mubr.bf16.mxu0 0
      %430 = vmatmul.mubr.bf16.gmra.mrb[0].mxu0 %v374
      %v431 = vpop.f32.mrb[0].mxu0
      %v432 = vadd.f32 %v364, %v431
      %v433 = vpop.f32.mrb[0].mxu0
      %v434 = vpop.f32.mrb[0].mxu0
      %v435 = vadd.f32 %v364, %v434
      %v436 = vpop.f32.mrb[0].mxu0
      %437 = vmatprep.mubr.bf16.mxu0 0
      %438 = vmatmul.mubr.bf16.gmra.mrb[0].mxu0 %v377
      %v439 = vpop.f32.mrb[0].mxu0
      %v440 = vadd.f32 %v364, %v439
      %v441 = vpop.f32.mrb[0].mxu0
      %v442 = vpop.f32.mrb[0].mxu0
      %v443 = vadd.f32 %v364, %v442
      %v444 = vpop.f32.mrb[0].mxu0
      %445 = vmatprep.mubr.bf16.mxu0 0
      %446 = vmatmul.mubr.bf16.gmra.mrb[0].mxu0 %v380
      %v447 = vpop.f32.mrb[0].mxu0
      %v448 = vadd.f32 %v364, %v447
      %v449 = vpop.f32.mrb[0].mxu0
      %v450 = vpop.f32.mrb[0].mxu0
      %v451 = vadd.f32 %v364, %v450
      %v452 = vpop.f32.mrb[0].mxu0
      %453 = vmatprep.mubr.bf16.mxu0 0
      %454 = vmatmul.mubr.bf16.gmra.mrb[0].mxu0 %v383
      %v455 = vpop.f32.mrb[0].mxu0
      %v456 = vadd.f32 %v364, %v455
      %v457 = vpop.f32.mrb[0].mxu0
      %v458 = vpop.f32.mrb[0].mxu0
      %v459 = vadd.f32 %v364, %v458
      %v460 = vpop.f32.mrb[0].mxu0
      %461 = vmatprep.mubr.bf16.mxu0 0
      %462 = vmatmul.mubr.bf16.gmra.mrb[0].mxu0 %v386
      %v463 = vpop.f32.mrb[0].mxu0
      %v464 = vadd.f32 %v364, %v463
      %v465 = vpop.f32.mrb[0].mxu0
      %v466 = vpop.f32.mrb[0].mxu0
      %v467 = vadd.f32 %v364, %v466
      %v468 = vpop.f32.mrb[0].mxu0
      %469 = vmatprep.mubr.bf16.mxu0 0
      %470 = vmatmul.mubr.bf16.gmra.mrb[0].mxu0 %v389
      %v471 = vpop.f32.mrb[0].mxu0
      %v472 = vadd.f32 %v364, %v471
      %v473 = vpop.f32.mrb[0].mxu0
      %v474 = vpop.f32.mrb[0].mxu0
      %v475 = vadd.f32 %v364, %v474
      %v476 = vpop.f32.mrb[0].mxu0
      %477 = vmatprep.mubr.bf16.mxu0 0
      %478 = vmatmul.mubr.bf16.gmra.mrb[0].mxu0 %v392
      %v479 = vpop.f32.mrb[0].mxu0
      %v480 = vadd.f32 %v364, %v479
      %v481 = vpop.f32.mrb[0].mxu0
      %v482 = vpop.f32.mrb[0].mxu0
      %v483 = vadd.f32 %v364, %v482
      %v484 = vpop.f32.mrb[0].mxu0
      %485 = vmatprep.mubr.bf16.mxu0 0
      %486 = vmatmul.mubr.bf16.gmra.mrb[0].mxu0 %v395
      %v487 = vpop.f32.mrb[0].mxu0
      %v488 = vadd.f32 %v364, %v487
      %v489 = vpop.f32.mrb[0].mxu0
      %v490 = vpop.f32.mrb[0].mxu0
      %v491 = vadd.f32 %v364, %v490
      %v492 = vpop.f32.mrb[0].mxu0
      %493 = vdwg.mxu0
      %v494 = vpack.c.bf16 %v435, %v432
      %v495 = vpack.c.bf16 %v443, %v440
      %v496 = vpack.c.bf16 %v451, %v448
      %v497 = vpack.c.bf16 %v459, %v456
      %v498 = vpack.c.bf16 %v467, %v464
      %v499 = vpack.c.bf16 %v475, %v472
      %v500 = vpack.c.bf16 %v483, %v480
      %v501 = vpack.c.bf16 %v491, %v488
      %502 = vst.msk [vmem:[#allocation2] sm:$0xff] %vm372, 0.0
      %503 = vst.msk [vmem:[#allocation2 + $0x8] sm:$0xff] %vm372, 0.0
      %504 = vst.msk [vmem:[#allocation2 + $0x10] sm:$0xff] %vm372, 0.0
      %505 = vst.msk [vmem:[#allocation2 + $0x18] sm:$0xff] %vm372, 0.0
      %506 = vst.msk [vmem:[#allocation2 + $0x20] sm:$0xff] %vm372, 0.0
      %507 = vst.msk [vmem:[#allocation2 + $0x28] sm:$0xff] %vm372, 0.0
      %508 = vst.msk [vmem:[#allocation2 + $0x30] sm:$0xff] %vm372, 0.0
      %509 = vst.msk [vmem:[#allocation2 + $0x38] sm:$0xff] %vm372, 0.0
      %510 = vst.msk [vmem:[#allocation2 + $0x40] sm:$0xff] %vm372, 0.0
      %511 = vst.msk [vmem:[#allocation2 + $0x48] sm:$0xff] %vm372, 0.0
      %512 = vst.msk [vmem:[#allocation2 + $0x50] sm:$0xff] %vm372, 0.0
      %513 = vst.msk [vmem:[#allocation2 + $0x58] sm:$0xff] %vm372, 0.0
      %514 = vst.msk [vmem:[#allocation2 + $0x60] sm:$0xff] %vm372, 0.0
      %515 = vst.msk [vmem:[#allocation2 + $0x68] sm:$0xff] %vm372, 0.0
      %516 = vst.msk [vmem:[#allocation2 + $0x70] sm:$0xff] %vm372, 0.0
      %517 = vst.msk [vmem:[#allocation2 + $0x78] sm:$0xff] %vm372, 0.0
      loop: start=0, step=1, limit=4
      $region45: #{tpu_custom_call.1} parent=43 // loop_pre_header
        _
      $region46: #{tpu_custom_call.1} parent=43 // loop_header
        %s519 = sphi 0, %s523
        %p520 = scmp.ge.s32.totalorder %s519, 4
        %v524 = vphi -inf, %v782
        %v525 = vphi -inf, %v783
        %v526 = vphi -inf, %v784
        %v527 = vphi -inf, %v785
        %v528 = vphi -inf, %v786
        %v529 = vphi -inf, %v787
        %v530 = vphi -inf, %v788
        %v531 = vphi -inf, %v789
        %v532 = vphi -inf, %v790
        %v533 = vphi -inf, %v791
        %v534 = vphi -inf, %v792
        %v535 = vphi -inf, %v793
        %v536 = vphi -inf, %v794
        %v537 = vphi -inf, %v795
        %v538 = vphi -inf, %v796
        %v539 = vphi -inf, %v797
        %v540 = vphi 0.0, %v958
        %v541 = vphi 0.0, %v959
        %v542 = vphi 0.0, %v960
        %v543 = vphi 0.0, %v961
        %v544 = vphi 0.0, %v962
        %v545 = vphi 0.0, %v963
        %v546 = vphi 0.0, %v964
        %v547 = vphi 0.0, %v965
        %v548 = vphi 0.0, %v966
        %v549 = vphi 0.0, %v967
        %v550 = vphi 0.0, %v968
        %v551 = vphi 0.0, %v969
        %v552 = vphi 0.0, %v970
        %v553 = vphi 0.0, %v971
        %v554 = vphi 0.0, %v972
        %v555 = vphi 0.0, %v973
      $region47: #{tpu_custom_call.1} parent=43 // loop_header_branch
        %522 = sbr.rel (%p520) target = $region51
      $region48: #{tpu_custom_call.1} parent=43 // loop_body
        %s556 = smul.u32 %s519, 64
        %s557 = sshra.s32 %s556, 3
        %s558 = sand.u32 %s556, 7
        %s559 = smul.addr %s557, 4
        %s560 = scalar_lea.vmem %s316, %s559
        %v561 = vld [vmem:[%s560] sm:$0xf]
        %v562 = vld [vmem:[%s560 + $0x4] sm:$0xf]
        %v563 = vld [vmem:[%s560 + $0x8] sm:$0xf]
        %v564 = vld [vmem:[%s560 + $0xc] sm:$0xf]
        %v565 = vld [vmem:[%s560 + $0x10] sm:$0xf]
        %v566 = vld [vmem:[%s560 + $0x14] sm:$0xf]
        %v567 = vld [vmem:[%s560 + $0x18] sm:$0xf]
        %v568 = vld [vmem:[%s560 + $0x1c] sm:$0xf]
        %s569 = smul.addr %s557, 4
        %s570 = scalar_lea.vmem %s321, %s569
        %v571 = vld [vmem:[%s570] sm:$0xf]
        %v572 = vld [vmem:[%s570 + $0x4] sm:$0xf]
        %v573 = vld [vmem:[%s570 + $0x8] sm:$0xf]
        %v574 = vld [vmem:[%s570 + $0xc] sm:$0xf]
        %v575 = vld [vmem:[%s570 + $0x10] sm:$0xf]
        %v576 = vld [vmem:[%s570 + $0x14] sm:$0xf]
        %v577 = vld [vmem:[%s570 + $0x18] sm:$0xf]
        %v578 = vld [vmem:[%s570 + $0x1c] sm:$0xf]
        %v587 = vunpack.c.l.b16 %v561
        %v588 = vunpack.c.l.b16 %v562
        %v589 = vunpack.c.l.b16 %v563
        %v590 = vunpack.c.l.b16 %v564
        %v591 = vunpack.c.l.b16 %v565
        %v592 = vunpack.c.l.b16 %v566
        %v593 = vunpack.c.l.b16 %v567
        %v594 = vunpack.c.l.b16 %v568
        %v595 = vpack.c.b16 %v588, %v587
        %v596 = vpack.c.b16 %v590, %v589
        %v597 = vpack.c.b16 %v592, %v591
        %v598 = vpack.c.b16 %v594, %v593
        %vm599 = vcmask 15360
        %v601 = vsel %vm599, %v494, 0
        %v604 = vsel %vm599, %v495, 0
        %v607 = vsel %vm599, %v496, 0
        %v610 = vsel %vm599, %v497, 0
        %v613 = vsel %vm599, %v498, 0
        %v616 = vsel %vm599, %v499, 0
        %v619 = vsel %vm599, %v500, 0
        %v622 = vsel %vm599, %v501, 0
        %v625 = vsel %vm599, %v595, 0
        %v628 = vsel %vm599, %v596, 0
        %v631 = vsel %vm599, %v597, 0
        %v634 = vsel %vm599, %v598, 0
        %636 = vmatprep.subr.bf16.mxu0 0
        %637 = vmatpush1.bf16.xpose.msra.mxu0 %v625
        %638 = vmatprep.subr.bf16.mxu0 0
        %639 = vmatpush1.bf16.xpose.msra.mxu0 %v628
        %640 = vmatprep.subr.bf16.mxu0 0
        %641 = vmatpush1.bf16.xpose.msra.mxu0 %v631
        %642 = vmatprep.subr.bf16.mxu0 0
        %643 = vmatpush1.bf16.xpose.msra.mxu0 %v634
        %644 = vmatprep.subr.bf16.mxu0 0
        %645 = vmatpush1.bf16.xpose.msra.mxu0 0
        %646 = vmatprep.subr.bf16.mxu0 0
        %647 = vmatpush1.bf16.xpose.msra.mxu0 0
        %648 = vmatprep.subr.bf16.mxu0 0
        %649 = vmatpush1.bf16.xpose.msra.mxu0 0
        %650 = vmatprep.subr.bf16.mxu0 0
        %651 = vmatpush1.bf16.xpose.msra.mxu0 0
        %652 = vmatprep.subr.bf16.mxu0 0
        %653 = vmatpush1.bf16.xpose.msra.mxu0 0
        %654 = vmatprep.subr.bf16.mxu0 0
        %655 = vmatpush1.bf16.xpose.msra.mxu0 0
        %656 = vmatprep.subr.bf16.mxu0 0
        %657 = vmatpush1.bf16.xpose.msra.mxu0 0
        %658 = vmatprep.subr.bf16.mxu0 0
        %659 = vmatpush1.bf16.xpose.msra.mxu0 0
        %660 = vmatprep.subr.bf16.mxu0 0
        %661 = vmatpush1.bf16.xpose.msra.mxu0 0
        %662 = vmatprep.subr.bf16.mxu0 0
        %663 = vmatpush1.bf16.xpose.msra.mxu0 0
        %664 = vmatprep.subr.bf16.mxu0 0
        %665 = vmatpush1.bf16.xpose.msra.mxu0 0
        %666 = vmatprep.subr.bf16.mxu0 0
        %667 = vmatpush1.bf16.xpose.msra.mxu0 0
        %668 = vmatprep.mubr.bf16.mxu0 0
        %669 = vmatmul.mubr.bf16.gmra.mrb[0].mxu0 %v601
        %v670 = vpop.f32.mrb[0].mxu0
        %v671 = vadd.f32 0.0, %v670
        %v672 = vpop.f32.mrb[0].mxu0
        %v673 = vpop.f32.mrb[0].mxu0
        %v674 = vadd.f32 0.0, %v673
        %v675 = vpop.f32.mrb[0].mxu0
        %676 = vmatprep.mubr.bf16.mxu0 0
        %677 = vmatmul.mubr.bf16.gmra.mrb[0].mxu0 %v604
        %v678 = vpop.f32.mrb[0].mxu0
        %v679 = vadd.f32 0.0, %v678
        %v680 = vpop.f32.mrb[0].mxu0
        %v681 = vpop.f32.mrb[0].mxu0
        %v682 = vadd.f32 0.0, %v681
        %v683 = vpop.f32.mrb[0].mxu0
        %684 = vmatprep.mubr.bf16.mxu0 0
        %685 = vmatmul.mubr.bf16.gmra.mrb[0].mxu0 %v607
        %v686 = vpop.f32.mrb[0].mxu0
        %v687 = vadd.f32 0.0, %v686
        %v688 = vpop.f32.mrb[0].mxu0
        %v689 = vpop.f32.mrb[0].mxu0
        %v690 = vadd.f32 0.0, %v689
        %v691 = vpop.f32.mrb[0].mxu0
        %692 = vmatprep.mubr.bf16.mxu0 0
        %693 = vmatmul.mubr.bf16.gmra.mrb[0].mxu0 %v610
        %v694 = vpop.f32.mrb[0].mxu0
        %v695 = vadd.f32 0.0, %v694
        %v696 = vpop.f32.mrb[0].mxu0
        %v697 = vpop.f32.mrb[0].mxu0
        %v698 = vadd.f32 0.0, %v697
        %v699 = vpop.f32.mrb[0].mxu0
        %700 = vmatprep.mubr.bf16.mxu0 0
        %701 = vmatmul.mubr.bf16.gmra.mrb[0].mxu0 %v613
        %v702 = vpop.f32.mrb[0].mxu0
        %v703 = vadd.f32 0.0, %v702
        %v704 = vpop.f32.mrb[0].mxu0
        %v705 = vpop.f32.mrb[0].mxu0
        %v706 = vadd.f32 0.0, %v705
        %v707 = vpop.f32.mrb[0].mxu0
        %708 = vmatprep.mubr.bf16.mxu0 0
        %709 = vmatmul.mubr.bf16.gmra.mrb[0].mxu0 %v616
        %v710 = vpop.f32.mrb[0].mxu0
        %v711 = vadd.f32 0.0, %v710
        %v712 = vpop.f32.mrb[0].mxu0
        %v713 = vpop.f32.mrb[0].mxu0
        %v714 = vadd.f32 0.0, %v713
        %v715 = vpop.f32.mrb[0].mxu0
        %716 = vmatprep.mubr.bf16.mxu0 0
        %717 = vmatmul.mubr.bf16.gmra.mrb[0].mxu0 %v619
        %v718 = vpop.f32.mrb[0].mxu0
        %v719 = vadd.f32 0.0, %v718
        %v720 = vpop.f32.mrb[0].mxu0
        %v721 = vpop.f32.mrb[0].mxu0
        %v722 = vadd.f32 0.0, %v721
        %v723 = vpop.f32.mrb[0].mxu0
        %724 = vmatprep.mubr.bf16.mxu0 0
        %725 = vmatmul.mubr.bf16.gmra.mrb[0].mxu0 %v622
        %v726 = vpop.f32.mrb[0].mxu0
        %v727 = vadd.f32 0.0, %v726
        %v728 = vpop.f32.mrb[0].mxu0
        %v729 = vpop.f32.mrb[0].mxu0
        %v730 = vadd.f32 0.0, %v729
        %v731 = vpop.f32.mrb[0].mxu0
        %732 = vdwg.mxu0
        %vm733 = vcmask 523264
        %v734 = vsel %vm733, %v671, -inf
        %735 = vmax.xlane.f32.xlu0 %v734
        %v736 = vpop.xlane.xlu0 %735
        %v737 = vsel %vm733, %v674, -inf
        %738 = vmax.xlane.f32.xlu0 %v737
        %v739 = vpop.xlane.xlu0 %738
        %v740 = vsel %vm733, %v679, -inf
        %741 = vmax.xlane.f32.xlu0 %v740
        %v742 = vpop.xlane.xlu0 %741
        %v743 = vsel %vm733, %v682, -inf
        %744 = vmax.xlane.f32.xlu0 %v743
        %v745 = vpop.xlane.xlu0 %744
        %v746 = vsel %vm733, %v687, -inf
        %747 = vmax.xlane.f32.xlu0 %v746
        %v748 = vpop.xlane.xlu0 %747
        %v749 = vsel %vm733, %v690, -inf
        %750 = vmax.xlane.f32.xlu0 %v749
        %v751 = vpop.xlane.xlu0 %750
        %v752 = vsel %vm733, %v695, -inf
        %753 = vmax.xlane.f32.xlu0 %v752
        %v754 = vpop.xlane.xlu0 %753
        %v755 = vsel %vm733, %v698, -inf
        %756 = vmax.xlane.f32.xlu0 %v755
        %v757 = vpop.xlane.xlu0 %756
        %v758 = vsel %vm733, %v703, -inf
        %759 = vmax.xlane.f32.xlu0 %v758
        %v760 = vpop.xlane.xlu0 %759
        %v761 = vsel %vm733, %v706, -inf
        %762 = vmax.xlane.f32.xlu0 %v761
        %v763 = vpop.xlane.xlu0 %762
        %v764 = vsel %vm733, %v711, -inf
        %765 = vmax.xlane.f32.xlu0 %v764
        %v766 = vpop.xlane.xlu0 %765
        %v767 = vsel %vm733, %v714, -inf
        %768 = vmax.xlane.f32.xlu0 %v767
        %v769 = vpop.xlane.xlu0 %768
        %v770 = vsel %vm733, %v719, -inf
        %771 = vmax.xlane.f32.xlu0 %v770
        %v772 = vpop.xlane.xlu0 %771
        %v773 = vsel %vm733, %v722, -inf
        %774 = vmax.xlane.f32.xlu0 %v773
        %v775 = vpop.xlane.xlu0 %774
        %v776 = vsel %vm733, %v727, -inf
        %777 = vmax.xlane.f32.xlu0 %v776
        %v778 = vpop.xlane.xlu0 %777
        %v779 = vsel %vm733, %v730, -inf
        %780 = vmax.xlane.f32.xlu0 %v779
        %v781 = vpop.xlane.xlu0 %780
        %v782 = vmax.f32 %v524, %v736
        %v783 = vmax.f32 %v525, %v739
        %v784 = vmax.f32 %v526, %v742
        %v785 = vmax.f32 %v527, %v745
        %v786 = vmax.f32 %v528, %v748
        %v787 = vmax.f32 %v529, %v751
        %v788 = vmax.f32 %v530, %v754
        %v789 = vmax.f32 %v531, %v757
        %v790 = vmax.f32 %v532, %v760
        %v791 = vmax.f32 %v533, %v763
        %v792 = vmax.f32 %v534, %v766
        %v793 = vmax.f32 %v535, %v769
        %v794 = vmax.f32 %v536, %v772
        %v795 = vmax.f32 %v537, %v775
        %v796 = vmax.f32 %v538, %v778
        %v797 = vmax.f32 %v539, %v781
        %v798 = vsub.f32 %v524, %v782
        %v799 = vsub.f32 %v525, %v783
        %v800 = vsub.f32 %v526, %v784
        %v801 = vsub.f32 %v527, %v785
        %v802 = vsub.f32 %v528, %v786
        %v803 = vsub.f32 %v529, %v787
        %v804 = vsub.f32 %v530, %v788
        %v805 = vsub.f32 %v531, %v789
        %v806 = vsub.f32 %v532, %v790
        %v807 = vsub.f32 %v533, %v791
        %v808 = vsub.f32 %v534, %v792
        %v809 = vsub.f32 %v535, %v793
        %v810 = vsub.f32 %v536, %v794
        %v811 = vsub.f32 %v537, %v795
        %v812 = vsub.f32 %v538, %v796
        %v813 = vsub.f32 %v539, %v797
        %v814 = vmul.f32 %v798, 1.442695
        %v815 = vpow.pop %v814
        %v816 = vmul.f32 %v799, 1.442695
        %v817 = vpow.pop %v816
        %v818 = vmul.f32 %v800, 1.442695
        %v819 = vpow.pop %v818
        %v820 = vmul.f32 %v801, 1.442695
        %v821 = vpow.pop %v820
        %v822 = vmul.f32 %v802, 1.442695
        %v823 = vpow.pop %v822
        %v824 = vmul.f32 %v803, 1.442695
        %v825 = vpow.pop %v824
        %v826 = vmul.f32 %v804, 1.442695
        %v827 = vpow.pop %v826
        %v828 = vmul.f32 %v805, 1.442695
        %v829 = vpow.pop %v828
        %v830 = vmul.f32 %v806, 1.442695
        %v831 = vpow.pop %v830
        %v832 = vmul.f32 %v807, 1.442695
        %v833 = vpow.pop %v832
        %v834 = vmul.f32 %v808, 1.442695
        %v835 = vpow.pop %v834
        %v836 = vmul.f32 %v809, 1.442695
        %v837 = vpow.pop %v836
        %v838 = vmul.f32 %v810, 1.442695
        %v839 = vpow.pop %v838
        %v840 = vmul.f32 %v811, 1.442695
        %v841 = vpow.pop %v840
        %v842 = vmul.f32 %v812, 1.442695
        %v843 = vpow.pop %v842
        %v844 = vmul.f32 %v813, 1.442695
        %v845 = vpow.pop %v844
        %v846 = vsub.f32 %v671, %v782
        %v847 = vsub.f32 %v674, %v783
        %v848 = vsub.f32 %v679, %v784
        %v849 = vsub.f32 %v682, %v785
        %v850 = vsub.f32 %v687, %v786
        %v851 = vsub.f32 %v690, %v787
        %v852 = vsub.f32 %v695, %v788
        %v853 = vsub.f32 %v698, %v789
        %v854 = vsub.f32 %v703, %v790
        %v855 = vsub.f32 %v706, %v791
        %v856 = vsub.f32 %v711, %v792
        %v857 = vsub.f32 %v714, %v793
        %v858 = vsub.f32 %v719, %v794
        %v859 = vsub.f32 %v722, %v795
        %v860 = vsub.f32 %v727, %v796
        %v861 = vsub.f32 %v730, %v797
        %v862 = vmul.f32 %v846, 1.442695
        %v863 = vpow.pop %v862
        %v864 = vmul.f32 %v847, 1.442695
        %v865 = vpow.pop %v864
        %v866 = vmul.f32 %v848, 1.442695
        %v867 = vpow.pop %v866
        %v868 = vmul.f32 %v849, 1.442695
        %v869 = vpow.pop %v868
        %v870 = vmul.f32 %v850, 1.442695
        %v871 = vpow.pop %v870
        %v872 = vmul.f32 %v851, 1.442695
        %v873 = vpow.pop %v872
        %v874 = vmul.f32 %v852, 1.442695
        %v875 = vpow.pop %v874
        %v876 = vmul.f32 %v853, 1.442695
        %v877 = vpow.pop %v876
        %v878 = vmul.f32 %v854, 1.442695
        %v879 = vpow.pop %v878
        %v880 = vmul.f32 %v855, 1.442695
        %v881 = vpow.pop %v880
        %v882 = vmul.f32 %v856, 1.442695
        %v883 = vpow.pop %v882
        %v884 = vmul.f32 %v857, 1.442695
        %v885 = vpow.pop %v884
        %v886 = vmul.f32 %v858, 1.442695
        %v887 = vpow.pop %v886
        %v888 = vmul.f32 %v859, 1.442695
        %v889 = vpow.pop %v888
        %v890 = vmul.f32 %v860, 1.442695
        %v891 = vpow.pop %v890
        %v892 = vmul.f32 %v861, 1.442695
        %v893 = vpow.pop %v892
        %v894 = vmul.f32 %v815, %v540
        %v895 = vmul.f32 %v817, %v541
        %v896 = vmul.f32 %v819, %v542
        %v897 = vmul.f32 %v821, %v543
        %v898 = vmul.f32 %v823, %v544
        %v899 = vmul.f32 %v825, %v545
        %v900 = vmul.f32 %v827, %v546
        %v901 = vmul.f32 %v829, %v547
        %v902 = vmul.f32 %v831, %v548
        %v903 = vmul.f32 %v833, %v549
        %v904 = vmul.f32 %v835, %v550
        %v905 = vmul.f32 %v837, %v551
        %v906 = vmul.f32 %v839, %v552
        %v907 = vmul.f32 %v841, %v553
        %v908 = vmul.f32 %v843, %v554
        %v909 = vmul.f32 %v845, %v555
        %v910 = vsel %vm733, %v863, 0.0
        %911 = vadd.xlane.f32.xlu0 %v910
        %v912 = vpop.xlane.xlu0 %911
        %v913 = vsel %vm733, %v865, 0.0
        %914 = vadd.xlane.f32.xlu0 %v913
        %v915 = vpop.xlane.xlu0 %914
        %v916 = vsel %vm733, %v867, 0.0
        %917 = vadd.xlane.f32.xlu0 %v916
        %v918 = vpop.xlane.xlu0 %917
        %v919 = vsel %vm733, %v869, 0.0
        %920 = vadd.xlane.f32.xlu0 %v919
        %v921 = vpop.xlane.xlu0 %920
        %v922 = vsel %vm733, %v871, 0.0
        %923 = vadd.xlane.f32.xlu0 %v922
        %v924 = vpop.xlane.xlu0 %923
        %v925 = vsel %vm733, %v873, 0.0
        %926 = vadd.xlane.f32.xlu0 %v925
        %v927 = vpop.xlane.xlu0 %926
        %v928 = vsel %vm733, %v875, 0.0
        %929 = vadd.xlane.f32.xlu0 %v928
        %v930 = vpop.xlane.xlu0 %929
        %v931 = vsel %vm733, %v877, 0.0
        %932 = vadd.xlane.f32.xlu0 %v931
        %v933 = vpop.xlane.xlu0 %932
        %v934 = vsel %vm733, %v879, 0.0
        %935 = vadd.xlane.f32.xlu0 %v934
        %v936 = vpop.xlane.xlu0 %935
        %v937 = vsel %vm733, %v881, 0.0
        %938 = vadd.xlane.f32.xlu0 %v937
        %v939 = vpop.xlane.xlu0 %938
        %v940 = vsel %vm733, %v883, 0.0
        %941 = vadd.xlane.f32.xlu0 %v940
        %v942 = vpop.xlane.xlu0 %941
        %v943 = vsel %vm733, %v885, 0.0
        %944 = vadd.xlane.f32.xlu0 %v943
        %v945 = vpop.xlane.xlu0 %944
        %v946 = vsel %vm733, %v887, 0.0
        %947 = vadd.xlane.f32.xlu0 %v946
        %v948 = vpop.xlane.xlu0 %947
        %v949 = vsel %vm733, %v889, 0.0
        %950 = vadd.xlane.f32.xlu0 %v949
        %v951 = vpop.xlane.xlu0 %950
        %v952 = vsel %vm733, %v891, 0.0
        %953 = vadd.xlane.f32.xlu0 %v952
        %v954 = vpop.xlane.xlu0 %953
        %v955 = vsel %vm733, %v893, 0.0
        %956 = vadd.xlane.f32.xlu0 %v955
        %v957 = vpop.xlane.xlu0 %956
        %v958 = vadd.f32 %v894, %v912
        %v959 = vadd.f32 %v895, %v915
        %v960 = vadd.f32 %v896, %v918
        %v961 = vadd.f32 %v897, %v921
        %v962 = vadd.f32 %v898, %v924
        %v963 = vadd.f32 %v899, %v927
        %v964 = vadd.f32 %v900, %v930
        %v965 = vadd.f32 %v901, %v933
        %v966 = vadd.f32 %v902, %v936
        %v967 = vadd.f32 %v903, %v939
        %v968 = vadd.f32 %v904, %v942
        %v969 = vadd.f32 %v905, %v945
        %v970 = vadd.f32 %v906, %v948
        %v971 = vadd.f32 %v907, %v951
        %v972 = vadd.f32 %v908, %v954
        %v973 = vadd.f32 %v909, %v957
        %v974 = vld [vmem:[#allocation2] sm:$0xff]
        %v975 = vld [vmem:[#allocation2 + $0x8] sm:$0xff]
        %v976 = vld [vmem:[#allocation2 + $0x10] sm:$0xff]
        %v977 = vld [vmem:[#allocation2 + $0x18] sm:$0xff]
        %v978 = vld [vmem:[#allocation2 + $0x20] sm:$0xff]
        %v979 = vld [vmem:[#allocation2 + $0x28] sm:$0xff]
        %v980 = vld [vmem:[#allocation2 + $0x30] sm:$0xff]
        %v981 = vld [vmem:[#allocation2 + $0x38] sm:$0xff]
        %v982 = vld [vmem:[#allocation2 + $0x40] sm:$0xff]
        %v983 = vld [vmem:[#allocation2 + $0x48] sm:$0xff]
        %v984 = vld [vmem:[#allocation2 + $0x50] sm:$0xff]
        %v985 = vld [vmem:[#allocation2 + $0x58] sm:$0xff]
        %v986 = vld [vmem:[#allocation2 + $0x60] sm:$0xff]
        %v987 = vld [vmem:[#allocation2 + $0x68] sm:$0xff]
        %v988 = vld [vmem:[#allocation2 + $0x70] sm:$0xff]
        %v989 = vld [vmem:[#allocation2 + $0x78] sm:$0xff]
        %v990 = vmul.f32 %v815, %v974
        %v991 = vmul.f32 %v817, %v975
        %v992 = vmul.f32 %v819, %v976
        %v993 = vmul.f32 %v821, %v977
        %v994 = vmul.f32 %v823, %v978
        %v995 = vmul.f32 %v825, %v979
        %v996 = vmul.f32 %v827, %v980
        %v997 = vmul.f32 %v829, %v981
        %v998 = vmul.f32 %v831, %v982
        %v999 = vmul.f32 %v833, %v983
        %v1000 = vmul.f32 %v835, %v984
        %v1001 = vmul.f32 %v837, %v985
        %v1002 = vmul.f32 %v839, %v986
        %v1003 = vmul.f32 %v841, %v987
        %v1004 = vmul.f32 %v843, %v988
        %v1005 = vmul.f32 %v845, %v989
        %v1006 = vpack.c.bf16 %v865, %v863
        %v1007 = vpack.c.bf16 %v869, %v867
        %v1008 = vpack.c.bf16 %v873, %v871
        %v1009 = vpack.c.bf16 %v877, %v875
        %v1010 = vpack.c.bf16 %v881, %v879
        %v1011 = vpack.c.bf16 %v885, %v883
        %v1012 = vpack.c.bf16 %v889, %v887
        %v1013 = vpack.c.bf16 %v893, %v891
        %v1022 = vunpack.c.l.b16 %v571
        %v1023 = vunpack.c.l.b16 %v572
        %v1024 = vunpack.c.l.b16 %v573
        %v1025 = vunpack.c.l.b16 %v574
        %v1026 = vunpack.c.l.b16 %v575
        %v1027 = vunpack.c.l.b16 %v576
        %v1028 = vunpack.c.l.b16 %v577
        %v1029 = vunpack.c.l.b16 %v578
        %v1030 = vpack.c.b16 %v1023, %v1022
        %v1031 = vpack.c.b16 %v1025, %v1024
        %v1032 = vpack.c.b16 %v1027, %v1026
        %v1033 = vpack.c.b16 %v1029, %v1028
        %v1039 = vsel %vm733, %v1006, 0
        %v1042 = vsel %vm733, %v1007, 0
        %v1045 = vsel %vm733, %v1008, 0
        %v1048 = vsel %vm733, %v1009, 0
        %v1051 = vsel %vm733, %v1010, 0
        %v1054 = vsel %vm733, %v1011, 0
        %v1057 = vsel %vm733, %v1012, 0
        %v1060 = vsel %vm733, %v1013, 0
        %1062 = vmatprep.subr.bf16.mxu0 0
        %1063 = vmatpush1.bf16.msra.mxu0 %v1030
        %1064 = vmatprep.subr.bf16.mxu0 0
        %1065 = vmatpush1.bf16.msra.mxu0 %v1031
        %1066 = vmatprep.subr.bf16.mxu0 0
        %1067 = vmatpush1.bf16.msra.mxu0 %v1032
        %1068 = vmatprep.subr.bf16.mxu0 0
        %1069 = vmatpush1.bf16.msra.mxu0 %v1033
        %1070 = vmatprep.subr.bf16.mxu0 0
        %1071 = vmatpush1.bf16.msra.mxu0 0
        %1072 = vmatprep.subr.bf16.mxu0 0
        %1073 = vmatpush1.bf16.msra.mxu0 0
        %1074 = vmatprep.subr.bf16.mxu0 0
        %1075 = vmatpush1.bf16.msra.mxu0 0
        %1076 = vmatprep.subr.bf16.mxu0 0
        %1077 = vmatpush1.bf16.msra.mxu0 0
        %1078 = vmatprep.subr.bf16.mxu0 0
        %1079 = vmatpush1.bf16.msra.mxu0 0
        %1080 = vmatprep.subr.bf16.mxu0 0
        %1081 = vmatpush1.bf16.msra.mxu0 0
        %1082 = vmatprep.subr.bf16.mxu0 0
        %1083 = vmatpush1.bf16.msra.mxu0 0
        %1084 = vmatprep.subr.bf16.mxu0 0
        %1085 = vmatpush1.bf16.msra.mxu0 0
        %1086 = vmatprep.subr.bf16.mxu0 0
        %1087 = vmatpush1.bf16.msra.mxu0 0
        %1088 = vmatprep.subr.bf16.mxu0 0
        %1089 = vmatpush1.bf16.msra.mxu0 0
        %1090 = vmatprep.subr.bf16.mxu0 0
        %1091 = vmatpush1.bf16.msra.mxu0 0
        %1092 = vmatprep.subr.bf16.mxu0 0
        %1093 = vmatpush1.bf16.msra.mxu0 0
        %1094 = vmatprep.mubr.bf16.mxu0 0
        %1095 = vmatmul.mubr.bf16.gmra.mrb[0].mxu0 %v1039
        %v1096 = vpop.f32.mrb[0].mxu0
        %v1097 = vadd.f32 0.0, %v1096
        %v1098 = vpop.f32.mrb[0].mxu0
        %v1099 = vpop.f32.mrb[0].mxu0
        %v1100 = vadd.f32 0.0, %v1099
        %v1101 = vpop.f32.mrb[0].mxu0
        %1102 = vmatprep.mubr.bf16.mxu0 0
        %1103 = vmatmul.mubr.bf16.gmra.mrb[0].mxu0 %v1042
        %v1104 = vpop.f32.mrb[0].mxu0
        %v1105 = vadd.f32 0.0, %v1104
        %v1106 = vpop.f32.mrb[0].mxu0
        %v1107 = vpop.f32.mrb[0].mxu0
        %v1108 = vadd.f32 0.0, %v1107
        %v1109 = vpop.f32.mrb[0].mxu0
        %1110 = vmatprep.mubr.bf16.mxu0 0
        %1111 = vmatmul.mubr.bf16.gmra.mrb[0].mxu0 %v1045
        %v1112 = vpop.f32.mrb[0].mxu0
        %v1113 = vadd.f32 0.0, %v1112
        %v1114 = vpop.f32.mrb[0].mxu0
        %v1115 = vpop.f32.mrb[0].mxu0
        %v1116 = vadd.f32 0.0, %v1115
        %v1117 = vpop.f32.mrb[0].mxu0
        %1118 = vmatprep.mubr.bf16.mxu0 0
        %1119 = vmatmul.mubr.bf16.gmra.mrb[0].mxu0 %v1048
        %v1120 = vpop.f32.mrb[0].mxu0
        %v1121 = vadd.f32 0.0, %v1120
        %v1122 = vpop.f32.mrb[0].mxu0
        %v1123 = vpop.f32.mrb[0].mxu0
        %v1124 = vadd.f32 0.0, %v1123
        %v1125 = vpop.f32.mrb[0].mxu0
        %1126 = vmatprep.mubr.bf16.mxu0 0
        %1127 = vmatmul.mubr.bf16.gmra.mrb[0].mxu0 %v1051
        %v1128 = vpop.f32.mrb[0].mxu0
        %v1129 = vadd.f32 0.0, %v1128
        %v1130 = vpop.f32.mrb[0].mxu0
        %v1131 = vpop.f32.mrb[0].mxu0
        %v1132 = vadd.f32 0.0, %v1131
        %v1133 = vpop.f32.mrb[0].mxu0
        %1134 = vmatprep.mubr.bf16.mxu0 0
        %1135 = vmatmul.mubr.bf16.gmra.mrb[0].mxu0 %v1054
        %v1136 = vpop.f32.mrb[0].mxu0
        %v1137 = vadd.f32 0.0, %v1136
        %v1138 = vpop.f32.mrb[0].mxu0
        %v1139 = vpop.f32.mrb[0].mxu0
        %v1140 = vadd.f32 0.0, %v1139
        %v1141 = vpop.f32.mrb[0].mxu0
        %1142 = vmatprep.mubr.bf16.mxu0 0
        %1143 = vmatmul.mubr.bf16.gmra.mrb[0].mxu0 %v1057
        %v1144 = vpop.f32.mrb[0].mxu0
        %v1145 = vadd.f32 0.0, %v1144
        %v1146 = vpop.f32.mrb[0].mxu0
        %v1147 = vpop.f32.mrb[0].mxu0
        %v1148 = vadd.f32 0.0, %v1147
        %v1149 = vpop.f32.mrb[0].mxu0
        %1150 = vmatprep.mubr.bf16.mxu0 0
        %1151 = vmatmul.mubr.bf16.gmra.mrb[0].mxu0 %v1060
        %v1152 = vpop.f32.mrb[0].mxu0
        %v1153 = vadd.f32 0.0, %v1152
        %v1154 = vpop.f32.mrb[0].mxu0
        %v1155 = vpop.f32.mrb[0].mxu0
        %v1156 = vadd.f32 0.0, %v1155
        %v1157 = vpop.f32.mrb[0].mxu0
        %1158 = vdwg.mxu0
        %v1159 = vadd.f32 %v990, %v1097
        %v1160 = vadd.f32 %v991, %v1100
        %v1161 = vadd.f32 %v992, %v1105
        %v1162 = vadd.f32 %v993, %v1108
        %v1163 = vadd.f32 %v994, %v1113
        %v1164 = vadd.f32 %v995, %v1116
        %v1165 = vadd.f32 %v996, %v1121
        %v1166 = vadd.f32 %v997, %v1124
        %v1167 = vadd.f32 %v998, %v1129
        %v1168 = vadd.f32 %v999, %v1132
        %v1169 = vadd.f32 %v1000, %v1137
        %v1170 = vadd.f32 %v1001, %v1140
        %v1171 = vadd.f32 %v1002, %v1145
        %v1172 = vadd.f32 %v1003, %v1148
        %v1173 = vadd.f32 %v1004, %v1153
        %v1174 = vadd.f32 %v1005, %v1156
        %1175 = vst.msk [vmem:[#allocation2] sm:$0xff] %vm372, %v1159
        %1176 = vst.msk [vmem:[#allocation2 + $0x8] sm:$0xff] %vm372, %v1160
        %1177 = vst.msk [vmem:[#allocation2 + $0x10] sm:$0xff] %vm372, %v1161
        %1178 = vst.msk [vmem:[#allocation2 + $0x18] sm:$0xff] %vm372, %v1162
        %1179 = vst.msk [vmem:[#allocation2 + $0x20] sm:$0xff] %vm372, %v1163
        %1180 = vst.msk [vmem:[#allocation2 + $0x28] sm:$0xff] %vm372, %v1164
        %1181 = vst.msk [vmem:[#allocation2 + $0x30] sm:$0xff] %vm372, %v1165
        %1182 = vst.msk [vmem:[#allocation2 + $0x38] sm:$0xff] %vm372, %v1166
        %1183 = vst.msk [vmem:[#allocation2 + $0x40] sm:$0xff] %vm372, %v1167
        %1184 = vst.msk [vmem:[#allocation2 + $0x48] sm:$0xff] %vm372, %v1168
        %1185 = vst.msk [vmem:[#allocation2 + $0x50] sm:$0xff] %vm372, %v1169
        %1186 = vst.msk [vmem:[#allocation2 + $0x58] sm:$0xff] %vm372, %v1170
        %1187 = vst.msk [vmem:[#allocation2 + $0x60] sm:$0xff] %vm372, %v1171
        %1188 = vst.msk [vmem:[#allocation2 + $0x68] sm:$0xff] %vm372, %v1172
        %1189 = vst.msk [vmem:[#allocation2 + $0x70] sm:$0xff] %vm372, %v1173
        %1190 = vst.msk [vmem:[#allocation2 + $0x78] sm:$0xff] %vm372, %v1174
      $region49: #{tpu_custom_call.1} parent=43 // loop_footer
        %s523 = sadd.s32 1, %s519
      $region50: #{tpu_custom_call.1} parent=43 // loop_footer_branch
        %518 = sbr.rel target = $region46
      $region51: #{tpu_custom_call.1} parent=43 // loop_exit
        _
      %v1191 = vld [vmem:[#allocation2] sm:$0xff]
      %v1192 = vld [vmem:[#allocation2 + $0x8] sm:$0xff]
      %v1193 = vld [vmem:[#allocation2 + $0x10] sm:$0xff]
      %v1194 = vld [vmem:[#allocation2 + $0x18] sm:$0xff]
      %v1195 = vld [vmem:[#allocation2 + $0x20] sm:$0xff]
      %v1196 = vld [vmem:[#allocation2 + $0x28] sm:$0xff]
      %v1197 = vld [vmem:[#allocation2 + $0x30] sm:$0xff]
      %v1198 = vld [vmem:[#allocation2 + $0x38] sm:$0xff]
      %v1199 = vld [vmem:[#allocation2 + $0x40] sm:$0xff]
      %v1200 = vld [vmem:[#allocation2 + $0x48] sm:$0xff]
      %v1201 = vld [vmem:[#allocation2 + $0x50] sm:$0xff]
      %v1202 = vld [vmem:[#allocation2 + $0x58] sm:$0xff]
      %v1203 = vld [vmem:[#allocation2 + $0x60] sm:$0xff]
      %v1204 = vld [vmem:[#allocation2 + $0x68] sm:$0xff]
      %v1205 = vld [vmem:[#allocation2 + $0x70] sm:$0xff]
      %v1206 = vld [vmem:[#allocation2 + $0x78] sm:$0xff]
      %v1207 = vrcp.pop %v540
      %v1208 = vrcp.pop %v541
      %v1209 = vrcp.pop %v542
      %v1210 = vrcp.pop %v543
      %v1211 = vrcp.pop %v544
      %v1212 = vrcp.pop %v545
      %v1213 = vrcp.pop %v546
      %v1214 = vrcp.pop %v547
      %v1215 = vrcp.pop %v548
      %v1216 = vrcp.pop %v549
      %v1217 = vrcp.pop %v550
      %v1218 = vrcp.pop %v551
      %v1219 = vrcp.pop %v552
      %v1220 = vrcp.pop %v553
      %v1221 = vrcp.pop %v554
      %v1222 = vrcp.pop %v555
      %v1223 = vmul.f32 %v1191, %v1207
      %v1224 = vmul.f32 %v1192, %v1208
      %v1225 = vmul.f32 %v1193, %v1209
      %v1226 = vmul.f32 %v1194, %v1210
      %v1227 = vmul.f32 %v1195, %v1211
      %v1228 = vmul.f32 %v1196, %v1212
      %v1229 = vmul.f32 %v1197, %v1213
      %v1230 = vmul.f32 %v1198, %v1214
      %v1231 = vmul.f32 %v1199, %v1215
      %v1232 = vmul.f32 %v1200, %v1216
      %v1233 = vmul.f32 %v1201, %v1217
      %v1234 = vmul.f32 %v1202, %v1218
      %v1235 = vmul.f32 %v1203, %v1219
      %v1236 = vmul.f32 %v1204, %v1220
      %v1237 = vmul.f32 %v1205, %v1221
      %v1238 = vmul.f32 %v1206, %v1222
      %s1239 = sld [smem:[#allocation3]]
      %v1240 = vstv %s1239
      %v1241 = vmul.f32 %v1240, %v1223
      %v1242 = vmul.f32 %v1240, %v1224
      %v1243 = vmul.f32 %v1240, %v1225
      %v1244 = vmul.f32 %v1240, %v1226
      %v1245 = vmul.f32 %v1240, %v1227
      %v1246 = vmul.f32 %v1240, %v1228
      %v1247 = vmul.f32 %v1240, %v1229
      %v1248 = vmul.f32 %v1240, %v1230
      %v1249 = vmul.f32 %v1240, %v1231
      %v1250 = vmul.f32 %v1240, %v1232
      %v1251 = vmul.f32 %v1240, %v1233
      %v1252 = vmul.f32 %v1240, %v1234
      %v1253 = vmul.f32 %v1240, %v1235
      %v1254 = vmul.f32 %v1240, %v1236
      %v1255 = vmul.f32 %v1240, %v1237
      %v1256 = vmul.f32 %v1240, %v1238
      %v1257 = vld [vmem:[%s310] sm:$0xff]
      %v1258 = vld [vmem:[%s310 + $0x8] sm:$0xff]
      %v1259 = vld [vmem:[%s310 + $0x10] sm:$0xff]
      %v1260 = vld [vmem:[%s310 + $0x18] sm:$0xff]
      %v1261 = vld [vmem:[%s310 + $0x20] sm:$0xff]
      %v1262 = vld [vmem:[%s310 + $0x28] sm:$0xff]
      %v1263 = vld [vmem:[%s310 + $0x30] sm:$0xff]
      %v1264 = vld [vmem:[%s310 + $0x38] sm:$0xff]
      %v1265 = vld [vmem:[%s310 + $0x40] sm:$0xff]
      %v1266 = vld [vmem:[%s310 + $0x48] sm:$0xff]
      %v1267 = vld [vmem:[%s310 + $0x50] sm:$0xff]
      %v1268 = vld [vmem:[%s310 + $0x58] sm:$0xff]
      %v1269 = vld [vmem:[%s310 + $0x60] sm:$0xff]
      %v1270 = vld [vmem:[%s310 + $0x68] sm:$0xff]
      %v1271 = vld [vmem:[%s310 + $0x70] sm:$0xff]
      %v1272 = vld [vmem:[%s310 + $0x78] sm:$0xff]
      %v1273 = vadd.f32 %v1241, %v1257
      %v1274 = vadd.f32 %v1242, %v1258
      %v1275 = vadd.f32 %v1243, %v1259
      %v1276 = vadd.f32 %v1244, %v1260
      %v1277 = vadd.f32 %v1245, %v1261
      %v1278 = vadd.f32 %v1246, %v1262
      %v1279 = vadd.f32 %v1247, %v1263
      %v1280 = vadd.f32 %v1248, %v1264
      %v1281 = vadd.f32 %v1249, %v1265
      %v1282 = vadd.f32 %v1250, %v1266
      %v1283 = vadd.f32 %v1251, %v1267
      %v1284 = vadd.f32 %v1252, %v1268
      %v1285 = vadd.f32 %v1253, %v1269
      %v1286 = vadd.f32 %v1254, %v1270
      %v1287 = vadd.f32 %v1255, %v1271
      %v1288 = vadd.f32 %v1256, %v1272
      %1289 = vst.msk [vmem:[%s330] sm:$0xff] %vm372, %v1273
      %1290 = vst.msk [vmem:[%s330 + $0x8] sm:$0xff] %vm372, %v1274
      %1291 = vst.msk [vmem:[%s330 + $0x10] sm:$0xff] %vm372, %v1275
      %1292 = vst.msk [vmem:[%s330 + $0x18] sm:$0xff] %vm372, %v1276
      %1293 = vst.msk [vmem:[%s330 + $0x20] sm:$0xff] %vm372, %v1277
      %1294 = vst.msk [vmem:[%s330 + $0x28] sm:$0xff] %vm372, %v1278
      %1295 = vst.msk [vmem:[%s330 + $0x30] sm:$0xff] %vm372, %v1279
      %1296 = vst.msk [vmem:[%s330 + $0x38] sm:$0xff] %vm372, %v1280
      %1297 = vst.msk [vmem:[%s330 + $0x40] sm:$0xff] %vm372, %v1281
      %1298 = vst.msk [vmem:[%s330 + $0x48] sm:$0xff] %vm372, %v1282
      %1299 = vst.msk [vmem:[%s330 + $0x50] sm:$0xff] %vm372, %v1283
      %1300 = vst.msk [vmem:[%s330 + $0x58] sm:$0xff] %vm372, %v1284
      %1301 = vst.msk [vmem:[%s330 + $0x60] sm:$0xff] %vm372, %v1285
      %1302 = vst.msk [vmem:[%s330 + $0x68] sm:$0xff] %vm372, %v1286
      %1303 = vst.msk [vmem:[%s330 + $0x70] sm:$0xff] %vm372, %v1287
      %1304 = vst.msk [vmem:[%s330 + $0x78] sm:$0xff] %vm372, %v1288
      %s1305 = smul.u32 16, %s23
      %p1306 = scmp.lt.s32.totalorder %s22, 1
      %s1307 = scalar_select %p1306, %s22, 1
      %p1308 = scmp.lt.s32.totalorder %s1305, 31
      %s1309 = scalar_select %p1308, %s1305, 31
      %s1310 = smul.addr %s1307, 32
      %s1311 = sadd.s32 %s1309, %s1310
      %s1312 = smul.addr %s1311, 8
      %s1313 = scalar_lea.vmem %s6, %s1312
      // Predicated region
      $region52: #{tpu_custom_call.1} parent=43 // pred_check
        %p1314 = pneg %p193
      $region53: #{tpu_custom_call.1} parent=43 // pred_check_branch
        %1316 = sbr.rel (%p1314) target = $region55
      $region54: #{tpu_custom_call.1} parent=43 // pred_region
        %s1317 = smul.u32 16, %s23
      $region55: #{tpu_custom_call.1} parent=43 // pred_fallthru
        _
    $region44: #{tpu_custom_call.1} parent=5 // pred_fallthru
      _
    %p1318 = scmp.le.s32.totalorder 2, %s13
    // Predicated region
    $region56: #{tpu_custom_call.1} parent=5 // pred_check
      %p1319 = pneg %p1318
    $region57: #{tpu_custom_call.1} parent=5 // pred_check_branch
      %1321 = sbr.rel (%p1319) target = $region59
    $region58: #{tpu_custom_call.1} parent=5 // pred_region
      %s1322 = ssub.s32 %s13, 2
      // Predicated region
      $region60: #{tpu_custom_call.1} parent=58 // pred_check
        %p1323 = pneg %p199
      $region61: #{tpu_custom_call.1} parent=58 // pred_check_branch
        %1325 = sbr.rel (%p1323) target = $region63
      $region62: #{tpu_custom_call.1} parent=58 // pred_region
        %s1326 = smul.u32 16, %s25
        %p1327 = scmp.lt.s32.totalorder %s24, 1
        %s1328 = scalar_select %p1327, %s24, 1
        %p1329 = scmp.lt.s32.totalorder %s1326, 31
        %s1330 = scalar_select %p1329, %s1326, 31
        %s1331 = smul.addr %s1328, 32
        %s1332 = sadd.s32 %s1330, %s1331
        %s1333 = smul.addr %s1332, 8
        %s1334 = scalar_lea.vmem %s6, %s1333
      $region63: #{tpu_custom_call.1} parent=58 // pred_fallthru
        _
    $region59: #{tpu_custom_call.1} parent=5 // pred_fallthru
      _
  $region6: #{tpu_custom_call.1} parent=0 // loop_footer
    %s17 = sadd.s32 1, %s13
  $region7: #{tpu_custom_call.1} parent=0 // loop_footer_branch
    %12 = sbr.rel target = $region3
  $region8: #{tpu_custom_call.1} parent=0 // loop_exit
    _

</llo_original>
